<compile_context>
chip_gen: v6e
topology: v6e:2x2x1
jax: 0.10.0
libtpu: 0.0.40
codegen_flags: <defaults>
</compile_context>

<pallas_src>
import jax
import jax.numpy as jnp
from jax import lax
from jax.experimental import pallas as pl
from jax.experimental.pallas import tpu as pltpu

_VMEM_LIMIT = 32 * 1024 * 1024   # safe on v5e (128 MiB), v6e (128 MiB), v7x (64 MiB)
_TM_CAP = 512                    # activation-rows tile
_TN_CAP = 1024                   # out-channel tile (256-multiples feed the 256-wide MXU)
_TK_CAP = 2048                   # reduction tile


# ----------------------------------------------------------------------------
# Helpers: tile selection (avoid padding whenever dims already divide)
# ----------------------------------------------------------------------------
def _round_up(x, m):
    return ((x + m - 1) // m) * m


def _choose_m_tile(M, cap=_TM_CAP):
    """Tile for the (big) activation axis.  Prefer a divisor of M (no pad)."""
    if M <= cap:
        return M, M                       # full-dim block, no constraint
    t = cap
    while t >= 8:
        if t % 8 == 0 and M % t == 0:
            return t, M
        t -= 8
    return cap, _round_up(M, cap)         # rare fallback: pad


def _choose_lane_tile(dim, cap):
    """Tile for a lane-axis (N or K).  Prefer a 128-multiple divisor."""
    if dim <= cap:
        return dim, dim                   # full-dim block, no pad
    t = (cap // 128) * 128
    while t >= 128:
        if dim % t == 0:
            return t, dim
        t -= 128
    t = (cap // 128) * 128
    return t, _round_up(dim, t)           # rare fallback: pad


def _bn_tile_rows(M, C, budget=1 << 20):
    """Rows per BN tile so each f32 operand tile stays ~<=1 MiB."""
    max_rows = max(8, (budget // (4 * C)) // 8 * 8)
    if M <= max_rows:
        return M
    r = max_rows
    while r >= 8:
        if M % r == 0:
            return r
        r -= 8
    return M


# ----------------------------------------------------------------------------
# Pallas kernels
# ----------------------------------------------------------------------------
def _matmul_kernel(a_ref, b_ref, o_ref, acc_ref):
    @pl.when(pl.program_id(2) == 0)
    def _():
        acc_ref[...] = jnp.zeros_like(acc_ref)

    acc_ref[...] += jnp.dot(a_ref[...], b_ref[...],
                            preferred_element_type=jnp.float32)

    @pl.when(pl.program_id(2) == pl.num_programs(2) - 1)
    def _():
        o_ref[...] = acc_ref[...].astype(o_ref.dtype)


def _matmul_stats_kernel(a_ref, b_ref, o_ref, sum_ref, ssq_ref, acc_ref):
    """Matmul + fused per-tile column sum / sum-of-squares (BN statistics)."""
    @pl.when(pl.program_id(2) == 0)
    def _():
        acc_ref[...] = jnp.zeros_like(acc_ref)

    acc_ref[...] += jnp.dot(a_ref[...], b_ref[...],
                            preferred_element_type=jnp.float32)

    @pl.when(pl.program_id(2) == pl.num_programs(2) - 1)
    def _():
        acc = acc_ref[...]
        o_ref[...] = acc.astype(o_ref.dtype)
        sum_ref[...] = jnp.sum(acc, axis=0)[None, None, :]
        ssq_ref[...] = jnp.sum(acc * acc, axis=0)[None, None, :]


def _bn_kernel(x_ref, scale_ref, shift_ref, o_ref):
    o_ref[...] = x_ref[...] * scale_ref[...] + shift_ref[...]


def _bn_relu_kernel(x_ref, scale_ref, shift_ref, o_ref):
    o_ref[...] = jnp.maximum(x_ref[...] * scale_ref[...] + shift_ref[...], 0.0)


def _bn_add_relu_kernel(x_ref, scale_ref, shift_ref, res_ref, o_ref):
    y = x_ref[...] * scale_ref[...] + shift_ref[...] + res_ref[...]
    o_ref[...] = jnp.maximum(y, 0.0)


# ----------------------------------------------------------------------------
# Pallas wrappers
# ----------------------------------------------------------------------------
def pallas_matmul(a, b, with_stats=False):
    """a: (M, K), b: (K, N).  bf16 MXU matmul, f32 accumulator.
    If with_stats, also returns f32 column sum / sum-of-squares of the output
    (computed in the matmul epilogue -> no extra pass over the activation)."""
    M, K = a.shape
    K2, N = b.shape
    assert K == K2
    a = a.astype(jnp.bfloat16)
    b = b.astype(jnp.bfloat16)

    tm, Mp = _choose_m_tile(M)
    tn, Np = _choose_lane_tile(N, _TN_CAP)
    tk, Kp = _choose_lane_tile(K, _TK_CAP)

    if Mp != M or Kp != K:
        a = jnp.pad(a, ((0, Mp - M), (0, Kp - K)))
    if Kp != K or Np != N:
        b = jnp.pad(b, ((0, Kp - K), (0, Np - N)))

    gm, gn, gk = Mp // tm, Np // tn, Kp // tk

    in_specs = [pl.BlockSpec((tm, tk), lambda i, j, k: (i, k)),
                pl.BlockSpec((tk, tn), lambda i, j, k: (k, j))]
    out_spec_o = pl.BlockSpec((tm, tn), lambda i, j, k: (i, j))

    if with_stats:
        stat_spec = pl.BlockSpec((1, 1, tn), lambda i, j, k: (i, 0, j))
        out_shape = (jax.ShapeDtypeStruct((Mp, Np), jnp.float32),
                     jax.ShapeDtypeStruct((gm, 1, Np), jnp.float32),
                     jax.ShapeDtypeStruct((gm, 1, Np), jnp.float32))
        out_specs = (out_spec_o, stat_spec, stat_spec)
        kernel = _matmul_stats_kernel
    else:
        out_shape = jax.ShapeDtypeStruct((Mp, Np), jnp.float32)
        out_specs = out_spec_o
        kernel = _matmul_kernel

    res = pl.pallas_call(
        kernel,
        out_shape=out_shape,
        grid_spec=pltpu.PrefetchScalarGridSpec(
            num_scalar_prefetch=0,
            grid=(gm, gn, gk),
            in_specs=in_specs,
            out_specs=out_specs,
            scratch_shapes=[pltpu.VMEM((tm, tn), jnp.float32)],
        ),
        compiler_params=pltpu.CompilerParams(
            dimension_semantics=("parallel", "parallel", "arbitrary"),
            vmem_limit_bytes=_VMEM_LIMIT),
    )(a, b)

    if with_stats:
        out, sums, ssqs = res
        if Mp != M or Np != N:
            out = out[:M, :N]
        csum = jnp.sum(sums, axis=(0, 1))
        cssq = jnp.sum(ssqs, axis=(0, 1))
        if Np != N:
            csum, cssq = csum[:N], cssq[:N]
        return out, csum, cssq

    out = res
    if Mp != M or Np != N:
        out = out[:M, :N]
    return out


def bn_apply(x2d, csum, cssq, count, gamma, beta, residual=None, relu=True,
             eps=1e-5):
    """BatchNorm over axis 0 (== N*H*W) using batch statistics (PyTorch
    training-mode forward), fused with optional residual add and ReLU.
    Statistics (csum, cssq) come precomputed from the matmul epilogue.
    All elementwise math stays in f32 (v5e has no bf16 VPU)."""
    mean = csum / count
    var = jnp.maximum(cssq / count - mean * mean, 0.0)   # biased, as torch
    scale = (gamma / jnp.sqrt(var + eps)).astype(jnp.float32)
    shift = (beta - mean * scale).astype(jnp.float32)
    scale = scale.reshape(1, -1)
    shift = shift.reshape(1, -1)

    M, C = x2d.shape
    tr = _bn_tile_rows(M, C)
    x_spec = pl.BlockSpec((tr, C), lambda i: (i, 0))
    s_spec = pl.BlockSpec((1, C), lambda i: (0, 0))

    if residual is not None:
        kernel = _bn_add_relu_kernel
        in_specs = [x_spec, s_spec, s_spec, x_spec]
        args = (x2d, scale, shift, residual)
    else:
        kernel = _bn_relu_kernel if relu else _bn_kernel
        in_specs = [x_spec, s_spec, s_spec]
        args = (x2d, scale, shift)

    return pl.pallas_call(
        kernel,
        out_shape=jax.ShapeDtypeStruct((M, C), jnp.float32),
        grid_spec=pltpu.PrefetchScalarGridSpec(
            num_scalar_prefetch=0,
            grid=(M // tr,),
            in_specs=in_specs,
            out_specs=x_spec,
        ),
        compiler_params=pltpu.CompilerParams(
            dimension_semantics=("parallel",),
            vmem_limit_bytes=_VMEM_LIMIT),
    )(*args)


# ----------------------------------------------------------------------------
# Convolution via (bf16) im2col + Pallas matmul
# ----------------------------------------------------------------------------
def _im2col(x, kh, kw, stride, pad):
    """x: (N, H, W, C) -> bf16 (N*Ho*Wo, kh*kw*C), plus output geometry."""
    # TODO(synk): implicit GEMM (fold kh*kw offsets into the matmul K grid via
    # index_map over the NHWC slab) to avoid materializing patches in HBM.
    N, H, W, C = x.shape
    Ho = (H + 2 * pad - kh) // stride + 1
    Wo = (W + 2 * pad - kw) // stride + 1
    xb = x.astype(jnp.bfloat16)            # emit patches directly in bf16
    xp = jnp.pad(xb, ((0, 0), (pad, pad), (pad, pad), (0, 0)))
    cols = []
    for i in range(kh):
        for j in range(kw):
            cols.append(xp[:, i:i + (Ho - 1) * stride + 1:stride,
                           j:j + (Wo - 1) * stride + 1:stride, :])
    patches = jnp.stack(cols, axis=-2)      # (N, Ho, Wo, kh*kw, C)
    return patches.reshape(N * Ho * Wo, kh * kw * C), (N, Ho, Wo)


def conv2d(x_nhwc, w_oihw, stride, pad):
    """Conv + fused BN statistics.
    Returns ((N*Ho*Wo, Cout) f32, colsum, colssq, (N, Ho, Wo))."""
    cout, cin, kh, kw = w_oihw.shape
    if kh == 1 and kw == 1 and pad == 0:
        xs = x_nhwc[:, ::stride, ::stride, :] if stride > 1 else x_nhwc
        N, Ho, Wo, C = xs.shape
        cols = xs.reshape(N * Ho * Wo, C).astype(jnp.bfloat16)
        geom = (N, Ho, Wo)
    else:
        cols, geom = _im2col(x_nhwc, kh, kw, stride, pad)
    wmat = jnp.transpose(w_oihw, (2, 3, 1, 0)).reshape(kh * kw * cin, cout)
    out, csum, cssq = pallas_matmul(cols, wmat, with_stats=True)
    return out, csum, cssq, geom


def maxpool_3x3_s2_p1(x):
    """x: (N, H, W, C).  Single-pass 3x3 max pool, stride 2, pad 1 (-inf)."""
    return lax.reduce_window(
        x, -jnp.inf, lax.max,
        window_dimensions=(1, 3, 3, 1),
        window_strides=(1, 2, 2, 1),
        padding=((0, 0), (1, 1), (1, 1), (0, 0)))


# ----------------------------------------------------------------------------
# ResNet50 parameters (deterministic synthetic init)
# ----------------------------------------------------------------------------
def init_params(key, num_classes=26):
    keys = iter(jax.random.split(key, 256))

    def conv(cout, cin, kh, kw):
        std = (2.0 / (cin * kh * kw)) ** 0.5
        return jax.random.normal(next(keys), (cout, cin, kh, kw),
                                 jnp.float32) * std

    params = {
        "conv1_w": conv(64, 3, 7, 7),
        "bn1_g": jnp.ones((64,), jnp.float32),
        "bn1_b": jnp.zeros((64,), jnp.float32),
    }
    in_ch = 64
    layers = []
    for channels, blocks, stride in [(64, 3, 1), (128, 4, 2),
                                     (256, 6, 2), (512, 3, 2)]:
        layer = []
        for bidx in range(blocks):
            s = stride if bidx == 0 else 1
            p = {
                "stride": s,
                "conv1_w": conv(channels, in_ch, 1, 1),
                "bn1_g": jnp.ones((channels,)), "bn1_b": jnp.zeros((channels,)),
                "conv2_w": conv(channels, channels, 3, 3),
                "bn2_g": jnp.ones((channels,)), "bn2_b": jnp.zeros((channels,)),
                "conv3_w": conv(channels * 4, channels, 1, 1),
                "bn3_g": jnp.ones((channels * 4,)),
                "bn3_b": jnp.zeros((channels * 4,)),
            }
            if s != 1 or in_ch != channels * 4:
                p["ds_w"] = conv(channels * 4, in_ch, 1, 1)
                p["ds_g"] = jnp.ones((channels * 4,))
                p["ds_b"] = jnp.zeros((channels * 4,))
            in_ch = channels * 4
            layer.append(p)
        layers.append(layer)
    params["layers"] = layers
    fc_in = 512 * 4
    params["fc_w"] = jax.random.normal(next(keys), (num_classes, fc_in),
                                       jnp.float32) * (1.0 / fc_in ** 0.5)
    params["fc_b"] = jnp.zeros((num_classes,), jnp.float32)
    return params


# ----------------------------------------------------------------------------
# Forward pass
# ----------------------------------------------------------------------------
def bottleneck_forward(x, p):
    """x: (N, H, W, Cin) -> (N, Ho, Wo, 4*channels)."""
    N, H, W, Cin = x.shape
    s = p["stride"]

    out2d, c1, q1, (n, ho, wo) = conv2d(x, p["conv1_w"], 1, 0)
    out2d = bn_apply(out2d, c1, q1, float(n * ho * wo),
                     p["bn1_g"], p["bn1_b"], relu=True)
    out = out2d.reshape(n, ho, wo, -1)

    out2d, c2, q2, (n, ho, wo) = conv2d(out, p["conv2_w"], s, 1)
    out2d = bn_apply(out2d, c2, q2, float(n * ho * wo),
                     p["bn2_g"], p["bn2_b"], relu=True)
    out = out2d.reshape(n, ho, wo, -1)

    out2d, c3, q3, (n, ho, wo) = conv2d(out, p["conv3_w"], 1, 0)

    if "ds_w" in p:
        id2d, cd, qd, _ = conv2d(x, p["ds_w"], s, 0)
        id2d = bn_apply(id2d, cd, qd, float(n * ho * wo),
                        p["ds_g"], p["ds_b"], relu=False)
    else:
        id2d = x.reshape(N * H * W, Cin)

    out2d = bn_apply(out2d, c3, q3, float(n * ho * wo),
                     p["bn3_g"], p["bn3_b"], residual=id2d, relu=True)
    return out2d.reshape(n, ho, wo, -1)


def resnet50_forward(params, x_nchw):
    x = jnp.transpose(x_nchw.astype(jnp.float32), (0, 2, 3, 1))  # -> NHWC

    out2d, c0, q0, (n, ho, wo) = conv2d(x, params["conv1_w"], 2, 3)
    out2d = bn_apply(out2d, c0, q0, float(n * ho * wo),
                     params["bn1_g"], params["bn1_b"], relu=True)
    x = out2d.reshape(n, ho, wo, -1)

    x = maxpool_3x3_s2_p1(x)

    for layer in params["layers"]:
        for block in layer:
            x = bottleneck_forward(x, block)

    feat = jnp.mean(x, axis=(1, 2))                    # AdaptiveAvgPool(1,1)
    logits = pallas_matmul(feat, params["fc_w"].T) + params["fc_b"][None, :]
    return logits


# ----------------------------------------------------------------------------
if __name__ == "__main__":
    key = jax.random.PRNGKey(0)
    pkey, xkey = jax.random.split(key)
    params = init_params(pkey, num_classes=26)

    # Small but valid input: 32x32 keeps every stage's spatial size >= 1.
    x = jax.random.normal(xkey, (2, 3, 32, 32), jnp.float32)  # NCHW like torch

    logits = resnet50_forward(params, x)
    logits = jax.block_until_ready(logits)
    assert logits.shape == (2, 26), logits.shape
    assert bool(jnp.all(jnp.isfinite(logits)))
    print("KERNEL_OK")
</pallas_src>

<mosaic_0001>
module attributes {stable_mosaic.version = 11 : i64} {
  func.func @_matmul_stats_kernel(%arg0: i32, %arg1: i32, %arg2: i32, %arg3: memref<512x147xbf16, #tpu.memory_space<vmem>>, %arg4: memref<147x64xbf16, #tpu.memory_space<vmem>>, %arg5: memref<512x64xf32, #tpu.memory_space<vmem>>, %arg6: memref<1x1x64xf32, #tpu.memory_space<vmem>>, %arg7: memref<1x1x64xf32, #tpu.memory_space<vmem>>, %arg8: memref<512x64xf32, #tpu.memory_space<vmem>>) attributes {dimension_semantics = [#tpu.dimension_semantics<parallel>, #tpu.dimension_semantics<parallel>, #tpu.dimension_semantics<arbitrary>], iteration_bounds = array<i64: 1, 1, 1>, scalar_prefetch = 0 : i64, scratch_operands = 1 : i64, tpu.core_type = #tpu.core_type<tc>, window_params = [{transform_indices = @transform_0, window_bounds = array<i64: 512, 147>}, {transform_indices = @transform_1, window_bounds = array<i64: 147, 64>}, {transform_indices = @transform_2, window_bounds = array<i64: 512, 64>}, {transform_indices = @transform_3, window_bounds = array<i64: 1, 1, 64>}, {transform_indices = @transform_4, window_bounds = array<i64: 1, 1, 64>}]} {
    %c0_i32 = arith.constant 0 : i32
    %0 = arith.cmpi eq, %arg2, %c0_i32 : i32
    %1 = arith.extui %0 : i1 to i32
    %c0_i32_0 = arith.constant 0 : i32
    %2 = arith.cmpi ne, %1, %c0_i32_0 : i32
    scf.if %2 {
      %cst_10 = arith.constant 0.000000e+00 : f32
      %12 = vector.broadcast %cst_10 : f32 to vector<512x64xf32>
      %c0_11 = arith.constant 0 : index
      %c0_12 = arith.constant 0 : index
      %13 = vector.load %arg8[%c0_11, %c0_12] : memref<512x64xf32, #tpu.memory_space<vmem>>, vector<512x64xf32>
      tpu.vector_store %arg8[%c0_11, %c0_12], %12 {strides = array<i32>} : memref<512x64xf32, #tpu.memory_space<vmem>>, vector<512x64xf32>,
    } else {
    }
    %c0 = arith.constant 0 : index
    %c0_1 = arith.constant 0 : index
    %3 = vector.load %arg8[%c0, %c0_1] : memref<512x64xf32, #tpu.memory_space<vmem>>, vector<512x64xf32>
    %c0_2 = arith.constant 0 : index
    %c0_3 = arith.constant 0 : index
    %4 = vector.load %arg3[%c0_2, %c0_3] : memref<512x147xbf16, #tpu.memory_space<vmem>>, vector<512x147xbf16>
    %c0_4 = arith.constant 0 : index
    %c0_5 = arith.constant 0 : index
    %5 = vector.load %arg4[%c0_4, %c0_5] : memref<147x64xbf16, #tpu.memory_space<vmem>>, vector<147x64xbf16>
    %cst = arith.constant dense<0.000000e+00> : vector<512x64xf32>
    %6 = tpu.matmul %4, %5, %cst {dimension_numbers = #tpu.dot_dimension_numbers<[1], [0], [0], [1], [0, 0, 1, 1], [], []>} : vector<512x147xbf16>, vector<147x64xbf16>, vector<512x64xf32> -> vector<512x64xf32>
    %7 = arith.addf %3, %6 : vector<512x64xf32>
    %c0_6 = arith.constant 0 : index
    %c0_7 = arith.constant 0 : index
    %8 = vector.load %arg8[%c0_6, %c0_7] : memref<512x64xf32, #tpu.memory_space<vmem>>, vector<512x64xf32>
    tpu.vector_store %arg8[%c0_6, %c0_7], %7 {strides = array<i32>} : memref<512x64xf32, #tpu.memory_space<vmem>>, vector<512x64xf32>,
    %c0_i32_8 = arith.constant 0 : i32
    %9 = arith.cmpi eq, %arg2, %c0_i32_8 : i32
    %10 = arith.extui %9 : i1 to i32
    %c0_i32_9 = arith.constant 0 : i32
    %11 = arith.cmpi ne, %10, %c0_i32_9 : i32
    scf.if %11 {
      %c0_10 = arith.constant 0 : index
      %c0_11 = arith.constant 0 : index
      %12 = vector.load %arg8[%c0_10, %c0_11] : memref<512x64xf32, #tpu.memory_space<vmem>>, vector<512x64xf32>
      %c0_12 = arith.constant 0 : index
      %c0_13 = arith.constant 0 : index
      %13 = vector.load %arg5[%c0_12, %c0_13] : memref<512x64xf32, #tpu.memory_space<vmem>>, vector<512x64xf32>
      tpu.vector_store %arg5[%c0_12, %c0_13], %12 {strides = array<i32>} : memref<512x64xf32, #tpu.memory_space<vmem>>, vector<512x64xf32>,
      %cst_14 = arith.constant dense<0.000000e+00> : vector<64xf32>
      %14 = vector.multi_reduction <add>, %12, %cst_14 [0] : vector<512x64xf32> to vector<64xf32>
      %15 = vector.shape_cast %14 : vector<64xf32> to vector<1x1x64xf32>
      %c0_15 = arith.constant 0 : index
      %c0_16 = arith.constant 0 : index
      %c0_17 = arith.constant 0 : index
      %16 = vector.load %arg6[%c0_15, %c0_16, %c0_17] : memref<1x1x64xf32, #tpu.memory_space<vmem>>, vector<1x1x64xf32>
      tpu.vector_store %arg6[%c0_15, %c0_16, %c0_17], %15 {strides = array<i32>} : memref<1x1x64xf32, #tpu.memory_space<vmem>>, vector<1x1x64xf32>,
      %17 = arith.mulf %12, %12 : vector<512x64xf32>
      %cst_18 = arith.constant dense<0.000000e+00> : vector<64xf32>
      %18 = vector.multi_reduction <add>, %17, %cst_18 [0] : vector<512x64xf32> to vector<64xf32>
      %19 = vector.shape_cast %18 : vector<64xf32> to vector<1x1x64xf32>
      %c0_19 = arith.constant 0 : index
      %c0_20 = arith.constant 0 : index
      %c0_21 = arith.constant 0 : index
      %20 = vector.load %arg7[%c0_19, %c0_20, %c0_21] : memref<1x1x64xf32, #tpu.memory_space<vmem>>, vector<1x1x64xf32>
      tpu.vector_store %arg7[%c0_19, %c0_20, %c0_21], %19 {strides = array<i32>} : memref<1x1x64xf32, #tpu.memory_space<vmem>>, vector<1x1x64xf32>,
    } else {
    }
    return
  }
  func.func @transform_0(%arg0: i32, %arg1: i32, %arg2: i32) -> (i32, i32) {
    %c0_i32 = arith.constant 0 : i32
    return %arg0, %arg2 : i32, i32
  }
  func.func @transform_1(%arg0: i32, %arg1: i32, %arg2: i32) -> (i32, i32) {
    %c0_i32 = arith.constant 0 : i32
    return %arg2, %arg1 : i32, i32
  }
  func.func @transform_2(%arg0: i32, %arg1: i32, %arg2: i32) -> (i32, i32) {
    %c0_i32 = arith.constant 0 : i32
    return %arg0, %arg1 : i32, i32
  }
  func.func @transform_3(%arg0: i32, %arg1: i32, %arg2: i32) -> (i32, i32, i32) {
    %c0_i32 = arith.constant 0 : i32
    %c0_i32_0 = arith.constant 0 : i32
    return %arg0, %c0_i32, %arg1 : i32, i32, i32
  }
  func.func @transform_4(%arg0: i32, %arg1: i32, %arg2: i32) -> (i32, i32, i32) {
    %c0_i32 = arith.constant 0 : i32
    %c0_i32_0 = arith.constant 0 : i32
    return %arg0, %c0_i32, %arg1 : i32, i32, i32
  }
}

</mosaic_0001>

<llo_original>
// kernel: tpu_custom_call.1
$region0: #{tpu_custom_call.1}
  #allocation0 [shape = 'u32[]', space=smem, size = 0x4, offset = 0x4, fixed_abs, tag = 'smem constant byte address 0x4 - core index']
  #allocation1 [shape = 'u32[144,128]{1,0:T(1,128)}', space=vmem, size = 0x12000, scoped, tag = 'internal scratch']
  #allocation2 [shape = 'f32[512,64]{1,0:T(8,128)}', space=vmem, size = 0x40000, scoped, tag = 'scratch operand']
  %s0 = inlined_call_operand.vmem [shape: bf16[512,147], index: 0, kind: input, shape index: {}]
  %s1 = inlined_call_operand.vmem [shape: bf16[147,64], index: 1, kind: input, shape index: {}]
  %s2 = inlined_call_operand.vmem [shape: f32[512,64], index: 2, kind: output, shape index: {0}]
  %s3 = inlined_call_operand.hbm [shape: f32[1,1,64], index: 3, kind: output, shape index: {1}]
  %s4 = inlined_call_operand.hbm [shape: f32[1,1,64], index: 4, kind: output, shape index: {2}]
  %5 = xla_tuple %s2, %s3, %s4
  %s6 = sld [smem:[#allocation0]]
  $region42: #{tpu_custom_call.1} parent=0
    _
  %s8 = ssub.s32 1, %s6
  %s9 = scalar_select 0, %s8, %s6
  $region1: #{tpu_custom_call.1} parent=0
    #allocation3 [shape = 'u8[512]{0}', space=vmem, size = 0x400, scoped, tag = 'output window, operand 1, single buffered']
    #allocation4 [shape = 's32[1]{0}', space=sflag, size = 0x4, scoped, tag = 'scoped memory for tpu_custom_call.1']
    #allocation5 [shape = 'u8[512]{0}', space=vmem, size = 0x400, scoped, tag = 'output window, operand 2, single buffered']
    #allocation6 [shape = 's32[1]{0}', space=sflag, size = 0x4, scoped, tag = 'scoped memory for tpu_custom_call.1']
    %10 = vsyncpa [#allocation4], 0
    %11 = vsyncpa [#allocation6], 0
    // Predicated region
    $region2: #{tpu_custom_call.1} parent=1 // pred_check
      _
    $region3: #{tpu_custom_call.1} parent=1 // pred_check_branch
      %13 = sbr.rel (0) target = $region5
    $region4: #{tpu_custom_call.1} parent=1 // pred_region
      _
    $region5: #{tpu_custom_call.1} parent=1 // pred_fallthru
      _
    // Predicated region
    $region6: #{tpu_custom_call.1} parent=1 // pred_check
      _
    $region7: #{tpu_custom_call.1} parent=1 // pred_check_branch
      %15 = sbr.rel (0) target = $region9
    $region8: #{tpu_custom_call.1} parent=1 // pred_region
      _
    $region9: #{tpu_custom_call.1} parent=1 // pred_fallthru
      _
    %p17 = scmp.eq.s32.totalorder 0, 0
    // Predicated region
    $region10: #{tpu_custom_call.1} parent=1 // pred_check
      %p18 = pneg %p17
    $region11: #{tpu_custom_call.1} parent=1 // pred_check_branch
      %20 = sbr.rel (%p18) target = $region13
    $region12: #{tpu_custom_call.1} parent=1 // pred_region
      %vm21 = vcmask 523264
      %22 = vst.msk [vmem:[#allocation2] sm:$0xff] %vm21, 0.0
      %23 = vst.msk [vmem:[#allocation2 + $0x8] sm:$0xff] %vm21, 0.0
      %24 = vst.msk [vmem:[#allocation2 + $0x10] sm:$0xff] %vm21, 0.0
      %25 = vst.msk [vmem:[#allocation2 + $0x18] sm:$0xff] %vm21, 0.0
      %26 = vst.msk [vmem:[#allocation2 + $0x20] sm:$0xff] %vm21, 0.0
      %27 = vst.msk [vmem:[#allocation2 + $0x28] sm:$0xff] %vm21, 0.0
      %28 = vst.msk [vmem:[#allocation2 + $0x30] sm:$0xff] %vm21, 0.0
      %29 = vst.msk [vmem:[#allocation2 + $0x38] sm:$0xff] %vm21, 0.0
      %30 = vst.msk [vmem:[#allocation2 + $0x40] sm:$0xff] %vm21, 0.0
      %31 = vst.msk [vmem:[#allocation2 + $0x48] sm:$0xff] %vm21, 0.0
      %32 = vst.msk [vmem:[#allocation2 + $0x50] sm:$0xff] %vm21, 0.0
      %33 = vst.msk [vmem:[#allocation2 + $0x58] sm:$0xff] %vm21, 0.0
      %34 = vst.msk [vmem:[#allocation2 + $0x60] sm:$0xff] %vm21, 0.0
      %35 = vst.msk [vmem:[#allocation2 + $0x68] sm:$0xff] %vm21, 0.0
      %36 = vst.msk [vmem:[#allocation2 + $0x70] sm:$0xff] %vm21, 0.0
      %37 = vst.msk [vmem:[#allocation2 + $0x78] sm:$0xff] %vm21, 0.0
      %38 = vst.msk [vmem:[#allocation2 + $0x80] sm:$0xff] %vm21, 0.0
      %39 = vst.msk [vmem:[#allocation2 + $0x88] sm:$0xff] %vm21, 0.0
      %40 = vst.msk [vmem:[#allocation2 + $0x90] sm:$0xff] %vm21, 0.0
      %41 = vst.msk [vmem:[#allocation2 + $0x98] sm:$0xff] %vm21, 0.0
      %42 = vst.msk [vmem:[#allocation2 + $0xa0] sm:$0xff] %vm21, 0.0
      %43 = vst.msk [vmem:[#allocation2 + $0xa8] sm:$0xff] %vm21, 0.0
      %44 = vst.msk [vmem:[#allocation2 + $0xb0] sm:$0xff] %vm21, 0.0
      %45 = vst.msk [vmem:[#allocation2 + $0xb8] sm:$0xff] %vm21, 0.0
      %46 = vst.msk [vmem:[#allocation2 + $0xc0] sm:$0xff] %vm21, 0.0
      %47 = vst.msk [vmem:[#allocation2 + $0xc8] sm:$0xff] %vm21, 0.0
      %48 = vst.msk [vmem:[#allocation2 + $0xd0] sm:$0xff] %vm21, 0.0
      %49 = vst.msk [vmem:[#allocation2 + $0xd8] sm:$0xff] %vm21, 0.0
      %50 = vst.msk [vmem:[#allocation2 + $0xe0] sm:$0xff] %vm21, 0.0
      %51 = vst.msk [vmem:[#allocation2 + $0xe8] sm:$0xff] %vm21, 0.0
      %52 = vst.msk [vmem:[#allocation2 + $0xf0] sm:$0xff] %vm21, 0.0
      %53 = vst.msk [vmem:[#allocation2 + $0xf8] sm:$0xff] %vm21, 0.0
      %54 = vst.msk [vmem:[#allocation2 + $0x100] sm:$0xff] %vm21, 0.0
      %55 = vst.msk [vmem:[#allocation2 + $0x108] sm:$0xff] %vm21, 0.0
      %56 = vst.msk [vmem:[#allocation2 + $0x110] sm:$0xff] %vm21, 0.0
      %57 = vst.msk [vmem:[#allocation2 + $0x118] sm:$0xff] %vm21, 0.0
      %58 = vst.msk [vmem:[#allocation2 + $0x120] sm:$0xff] %vm21, 0.0
      %59 = vst.msk [vmem:[#allocation2 + $0x128] sm:$0xff] %vm21, 0.0
      %60 = vst.msk [vmem:[#allocation2 + $0x130] sm:$0xff] %vm21, 0.0
      %61 = vst.msk [vmem:[#allocation2 + $0x138] sm:$0xff] %vm21, 0.0
      %62 = vst.msk [vmem:[#allocation2 + $0x140] sm:$0xff] %vm21, 0.0
      %63 = vst.msk [vmem:[#allocation2 + $0x148] sm:$0xff] %vm21, 0.0
      %64 = vst.msk [vmem:[#allocation2 + $0x150] sm:$0xff] %vm21, 0.0
      %65 = vst.msk [vmem:[#allocation2 + $0x158] sm:$0xff] %vm21, 0.0
      %66 = vst.msk [vmem:[#allocation2 + $0x160] sm:$0xff] %vm21, 0.0
      %67 = vst.msk [vmem:[#allocation2 + $0x168] sm:$0xff] %vm21, 0.0
      %68 = vst.msk [vmem:[#allocation2 + $0x170] sm:$0xff] %vm21, 0.0
      %69 = vst.msk [vmem:[#allocation2 + $0x178] sm:$0xff] %vm21, 0.0
      %70 = vst.msk [vmem:[#allocation2 + $0x180] sm:$0xff] %vm21, 0.0
      %71 = vst.msk [vmem:[#allocation2 + $0x188] sm:$0xff] %vm21, 0.0
      %72 = vst.msk [vmem:[#allocation2 + $0x190] sm:$0xff] %vm21, 0.0
      %73 = vst.msk [vmem:[#allocation2 + $0x198] sm:$0xff] %vm21, 0.0
      %74 = vst.msk [vmem:[#allocation2 + $0x1a0] sm:$0xff] %vm21, 0.0
      %75 = vst.msk [vmem:[#allocation2 + $0x1a8] sm:$0xff] %vm21, 0.0
      %76 = vst.msk [vmem:[#allocation2 + $0x1b0] sm:$0xff] %vm21, 0.0
      %77 = vst.msk [vmem:[#allocation2 + $0x1b8] sm:$0xff] %vm21, 0.0
      %78 = vst.msk [vmem:[#allocation2 + $0x1c0] sm:$0xff] %vm21, 0.0
      %79 = vst.msk [vmem:[#allocation2 + $0x1c8] sm:$0xff] %vm21, 0.0
      %80 = vst.msk [vmem:[#allocation2 + $0x1d0] sm:$0xff] %vm21, 0.0
      %81 = vst.msk [vmem:[#allocation2 + $0x1d8] sm:$0xff] %vm21, 0.0
      %82 = vst.msk [vmem:[#allocation2 + $0x1e0] sm:$0xff] %vm21, 0.0
      %83 = vst.msk [vmem:[#allocation2 + $0x1e8] sm:$0xff] %vm21, 0.0
      %84 = vst.msk [vmem:[#allocation2 + $0x1f0] sm:$0xff] %vm21, 0.0
      %85 = vst.msk [vmem:[#allocation2 + $0x1f8] sm:$0xff] %vm21, 0.0
    $region13: #{tpu_custom_call.1} parent=1 // pred_fallthru
      _
    %v86 = vld [vmem:[#allocation2] sm:$0xff]
    %v87 = vld [vmem:[#allocation2 + $0x8] sm:$0xff]
    %v88 = vld [vmem:[#allocation2 + $0x10] sm:$0xff]
    %v89 = vld [vmem:[#allocation2 + $0x18] sm:$0xff]
    %v90 = vld [vmem:[#allocation2 + $0x20] sm:$0xff]
    %v91 = vld [vmem:[#allocation2 + $0x28] sm:$0xff]
    %v92 = vld [vmem:[#allocation2 + $0x30] sm:$0xff]
    %v93 = vld [vmem:[#allocation2 + $0x38] sm:$0xff]
    %v94 = vld [vmem:[#allocation2 + $0x40] sm:$0xff]
    %v95 = vld [vmem:[#allocation2 + $0x48] sm:$0xff]
    %v96 = vld [vmem:[#allocation2 + $0x50] sm:$0xff]
    %v97 = vld [vmem:[#allocation2 + $0x58] sm:$0xff]
    %v98 = vld [vmem:[#allocation2 + $0x60] sm:$0xff]
    %v99 = vld [vmem:[#allocation2 + $0x68] sm:$0xff]
    %v100 = vld [vmem:[#allocation2 + $0x70] sm:$0xff]
    %v101 = vld [vmem:[#allocation2 + $0x78] sm:$0xff]
    %v102 = vld [vmem:[#allocation2 + $0x80] sm:$0xff]
    %v103 = vld [vmem:[#allocation2 + $0x88] sm:$0xff]
    %v104 = vld [vmem:[#allocation2 + $0x90] sm:$0xff]
    %v105 = vld [vmem:[#allocation2 + $0x98] sm:$0xff]
    %v106 = vld [vmem:[#allocation2 + $0xa0] sm:$0xff]
    %v107 = vld [vmem:[#allocation2 + $0xa8] sm:$0xff]
    %v108 = vld [vmem:[#allocation2 + $0xb0] sm:$0xff]
    %v109 = vld [vmem:[#allocation2 + $0xb8] sm:$0xff]
    %v110 = vld [vmem:[#allocation2 + $0xc0] sm:$0xff]
    %v111 = vld [vmem:[#allocation2 + $0xc8] sm:$0xff]
    %v112 = vld [vmem:[#allocation2 + $0xd0] sm:$0xff]
    %v113 = vld [vmem:[#allocation2 + $0xd8] sm:$0xff]
    %v114 = vld [vmem:[#allocation2 + $0xe0] sm:$0xff]
    %v115 = vld [vmem:[#allocation2 + $0xe8] sm:$0xff]
    %v116 = vld [vmem:[#allocation2 + $0xf0] sm:$0xff]
    %v117 = vld [vmem:[#allocation2 + $0xf8] sm:$0xff]
    %v118 = vld [vmem:[#allocation2 + $0x100] sm:$0xff]
    %v119 = vld [vmem:[#allocation2 + $0x108] sm:$0xff]
    %v120 = vld [vmem:[#allocation2 + $0x110] sm:$0xff]
    %v121 = vld [vmem:[#allocation2 + $0x118] sm:$0xff]
    %v122 = vld [vmem:[#allocation2 + $0x120] sm:$0xff]
    %v123 = vld [vmem:[#allocation2 + $0x128] sm:$0xff]
    %v124 = vld [vmem:[#allocation2 + $0x130] sm:$0xff]
    %v125 = vld [vmem:[#allocation2 + $0x138] sm:$0xff]
    %v126 = vld [vmem:[#allocation2 + $0x140] sm:$0xff]
    %v127 = vld [vmem:[#allocation2 + $0x148] sm:$0xff]
    %v128 = vld [vmem:[#allocation2 + $0x150] sm:$0xff]
    %v129 = vld [vmem:[#allocation2 + $0x158] sm:$0xff]
    %v130 = vld [vmem:[#allocation2 + $0x160] sm:$0xff]
    %v131 = vld [vmem:[#allocation2 + $0x168] sm:$0xff]
    %v132 = vld [vmem:[#allocation2 + $0x170] sm:$0xff]
    %v133 = vld [vmem:[#allocation2 + $0x178] sm:$0xff]
    %v134 = vld [vmem:[#allocation2 + $0x180] sm:$0xff]
    %v135 = vld [vmem:[#allocation2 + $0x188] sm:$0xff]
    %v136 = vld [vmem:[#allocation2 + $0x190] sm:$0xff]
    %v137 = vld [vmem:[#allocation2 + $0x198] sm:$0xff]
    %v138 = vld [vmem:[#allocation2 + $0x1a0] sm:$0xff]
    %v139 = vld [vmem:[#allocation2 + $0x1a8] sm:$0xff]
    %v140 = vld [vmem:[#allocation2 + $0x1b0] sm:$0xff]
    %v141 = vld [vmem:[#allocation2 + $0x1b8] sm:$0xff]
    %v142 = vld [vmem:[#allocation2 + $0x1c0] sm:$0xff]
    %v143 = vld [vmem:[#allocation2 + $0x1c8] sm:$0xff]
    %v144 = vld [vmem:[#allocation2 + $0x1d0] sm:$0xff]
    %v145 = vld [vmem:[#allocation2 + $0x1d8] sm:$0xff]
    %v146 = vld [vmem:[#allocation2 + $0x1e0] sm:$0xff]
    %v147 = vld [vmem:[#allocation2 + $0x1e8] sm:$0xff]
    %v148 = vld [vmem:[#allocation2 + $0x1f0] sm:$0xff]
    %v149 = vld [vmem:[#allocation2 + $0x1f8] sm:$0xff]
    %v150 = vld [vmem:[%s0] sm:$0xff]
    %v151 = vld [vmem:[%s0 + $0x8] sm:$0xff]
    %v152 = vld [vmem:[%s0 + $0x10] sm:$0xff]
    %v153 = vld [vmem:[%s0 + $0x18] sm:$0xff]
    %v154 = vld [vmem:[%s0 + $0x20] sm:$0xff]
    %v155 = vld [vmem:[%s0 + $0x28] sm:$0xff]
    %v156 = vld [vmem:[%s0 + $0x30] sm:$0xff]
    %v157 = vld [vmem:[%s0 + $0x38] sm:$0xff]
    %v158 = vld [vmem:[%s0 + $0x40] sm:$0xff]
    %v159 = vld [vmem:[%s0 + $0x48] sm:$0xff]
    %v160 = vld [vmem:[%s0 + $0x50] sm:$0xff]
    %v161 = vld [vmem:[%s0 + $0x58] sm:$0xff]
    %v162 = vld [vmem:[%s0 + $0x60] sm:$0xff]
    %v163 = vld [vmem:[%s0 + $0x68] sm:$0xff]
    %v164 = vld [vmem:[%s0 + $0x70] sm:$0xff]
    %v165 = vld [vmem:[%s0 + $0x78] sm:$0xff]
    %v166 = vld [vmem:[%s0 + $0x80] sm:$0xff]
    %v167 = vld [vmem:[%s0 + $0x88] sm:$0xff]
    %v168 = vld [vmem:[%s0 + $0x90] sm:$0xff]
    %v169 = vld [vmem:[%s0 + $0x98] sm:$0xff]
    %v170 = vld [vmem:[%s0 + $0xa0] sm:$0xff]
    %v171 = vld [vmem:[%s0 + $0xa8] sm:$0xff]
    %v172 = vld [vmem:[%s0 + $0xb0] sm:$0xff]
    %v173 = vld [vmem:[%s0 + $0xb8] sm:$0xff]
    %v174 = vld [vmem:[%s0 + $0xc0] sm:$0xff]
    %v175 = vld [vmem:[%s0 + $0xc8] sm:$0xff]
    %v176 = vld [vmem:[%s0 + $0xd0] sm:$0xff]
    %v177 = vld [vmem:[%s0 + $0xd8] sm:$0xff]
    %v178 = vld [vmem:[%s0 + $0xe0] sm:$0xff]
    %v179 = vld [vmem:[%s0 + $0xe8] sm:$0xff]
    %v180 = vld [vmem:[%s0 + $0xf0] sm:$0xff]
    %v181 = vld [vmem:[%s0 + $0xf8] sm:$0xff]
    %v182 = vld [vmem:[%s0 + $0x100] sm:$0xff]
    %v183 = vld [vmem:[%s0 + $0x108] sm:$0xff]
    %v184 = vld [vmem:[%s0 + $0x110] sm:$0xff]
    %v185 = vld [vmem:[%s0 + $0x118] sm:$0xff]
    %v186 = vld [vmem:[%s0 + $0x120] sm:$0xff]
    %v187 = vld [vmem:[%s0 + $0x128] sm:$0xff]
    %v188 = vld [vmem:[%s0 + $0x130] sm:$0xff]
    %v189 = vld [vmem:[%s0 + $0x138] sm:$0xff]
    %v190 = vld [vmem:[%s0 + $0x140] sm:$0xff]
    %v191 = vld [vmem:[%s0 + $0x148] sm:$0xff]
    %v192 = vld [vmem:[%s0 + $0x150] sm:$0xff]
    %v193 = vld [vmem:[%s0 + $0x158] sm:$0xff]
    %v194 = vld [vmem:[%s0 + $0x160] sm:$0xff]
    %v195 = vld [vmem:[%s0 + $0x168] sm:$0xff]
    %v196 = vld [vmem:[%s0 + $0x170] sm:$0xff]
    %v197 = vld [vmem:[%s0 + $0x178] sm:$0xff]
    %v198 = vld [vmem:[%s0 + $0x180] sm:$0xff]
    %v199 = vld [vmem:[%s0 + $0x188] sm:$0xff]
    %v200 = vld [vmem:[%s0 + $0x190] sm:$0xff]
    %v201 = vld [vmem:[%s0 + $0x198] sm:$0xff]
    %v202 = vld [vmem:[%s0 + $0x1a0] sm:$0xff]
    %v203 = vld [vmem:[%s0 + $0x1a8] sm:$0xff]
    %v204 = vld [vmem:[%s0 + $0x1b0] sm:$0xff]
    %v205 = vld [vmem:[%s0 + $0x1b8] sm:$0xff]
    %v206 = vld [vmem:[%s0 + $0x1c0] sm:$0xff]
    %v207 = vld [vmem:[%s0 + $0x1c8] sm:$0xff]
    %v208 = vld [vmem:[%s0 + $0x1d0] sm:$0xff]
    %v209 = vld [vmem:[%s0 + $0x1d8] sm:$0xff]
    %v210 = vld [vmem:[%s0 + $0x1e0] sm:$0xff]
    %v211 = vld [vmem:[%s0 + $0x1e8] sm:$0xff]
    %v212 = vld [vmem:[%s0 + $0x1f0] sm:$0xff]
    %v213 = vld [vmem:[%s0 + $0x1f8] sm:$0xff]
    %v214 = vld [vmem:[%s1] sm:$0xf]
    %v215 = vld [vmem:[%s1 + $0x4] sm:$0xf]
    %v216 = vld [vmem:[%s1 + $0x8] sm:$0xf]
    %v217 = vld [vmem:[%s1 + $0xc] sm:$0xf]
    %v218 = vld [vmem:[%s1 + $0x10] sm:$0xf]
    %v219 = vld [vmem:[%s1 + $0x14] sm:$0xf]
    %v220 = vld [vmem:[%s1 + $0x18] sm:$0xf]
    %v221 = vld [vmem:[%s1 + $0x1c] sm:$0xf]
    %v222 = vld [vmem:[%s1 + $0x20] sm:$0xf]
    %v223 = vld [vmem:[%s1 + $0x24] sm:$0xf]
    %v224 = vld [vmem:[%s1 + $0x28] sm:$0xf]
    %v225 = vld [vmem:[%s1 + $0x2c] sm:$0xf]
    %v226 = vld [vmem:[%s1 + $0x30] sm:$0xf]
    %v227 = vld [vmem:[%s1 + $0x34] sm:$0xf]
    %v228 = vld [vmem:[%s1 + $0x38] sm:$0xf]
    %v229 = vld [vmem:[%s1 + $0x3c] sm:$0xf]
    %v230 = vld [vmem:[%s1 + $0x40] sm:$0xf]
    %v231 = vld [vmem:[%s1 + $0x44] sm:$0xf]
    %v232 = vld [vmem:[%s1 + $0x48] sm:$0x3]
    %v297 = vunpack.c.l.b16 %v150
    %v298 = vunpack.c.h.b16 %v150
    %v299 = vunpack.c.l.b16 %v151
    %v300 = vunpack.c.h.b16 %v151
    %v301 = vunpack.c.l.b16 %v152
    %v302 = vunpack.c.h.b16 %v152
    %v303 = vunpack.c.l.b16 %v153
    %v304 = vunpack.c.h.b16 %v153
    %v305 = vunpack.c.l.b16 %v154
    %v306 = vunpack.c.h.b16 %v154
    %v307 = vunpack.c.l.b16 %v155
    %v308 = vunpack.c.h.b16 %v155
    %v309 = vunpack.c.l.b16 %v156
    %v310 = vunpack.c.h.b16 %v156
    %v311 = vunpack.c.l.b16 %v157
    %v312 = vunpack.c.h.b16 %v157
    %v313 = vunpack.c.l.b16 %v158
    %v314 = vunpack.c.h.b16 %v158
    %v315 = vunpack.c.l.b16 %v159
    %v316 = vunpack.c.h.b16 %v159
    %v317 = vunpack.c.l.b16 %v160
    %v318 = vunpack.c.h.b16 %v160
    %v319 = vunpack.c.l.b16 %v161
    %v320 = vunpack.c.h.b16 %v161
    %v321 = vunpack.c.l.b16 %v162
    %v322 = vunpack.c.h.b16 %v162
    %v323 = vunpack.c.l.b16 %v163
    %v324 = vunpack.c.h.b16 %v163
    %v325 = vunpack.c.l.b16 %v164
    %v326 = vunpack.c.h.b16 %v164
    %v327 = vunpack.c.l.b16 %v165
    %v328 = vunpack.c.h.b16 %v165
    %v329 = vunpack.c.l.b16 %v166
    %v330 = vunpack.c.h.b16 %v166
    %v331 = vunpack.c.l.b16 %v167
    %v332 = vunpack.c.h.b16 %v167
    %v333 = vunpack.c.l.b16 %v168
    %v334 = vunpack.c.h.b16 %v168
    %v335 = vunpack.c.l.b16 %v169
    %v336 = vunpack.c.h.b16 %v169
    %v337 = vunpack.c.l.b16 %v170
    %v338 = vunpack.c.h.b16 %v170
    %v339 = vunpack.c.l.b16 %v171
    %v340 = vunpack.c.h.b16 %v171
    %v341 = vunpack.c.l.b16 %v172
    %v342 = vunpack.c.h.b16 %v172
    %v343 = vunpack.c.l.b16 %v173
    %v344 = vunpack.c.h.b16 %v173
    %v345 = vunpack.c.l.b16 %v174
    %v346 = vunpack.c.h.b16 %v174
    %v347 = vunpack.c.l.b16 %v175
    %v348 = vunpack.c.h.b16 %v175
    %v349 = vunpack.c.l.b16 %v176
    %v350 = vunpack.c.h.b16 %v176
    %v351 = vunpack.c.l.b16 %v177
    %v352 = vunpack.c.h.b16 %v177
    %v353 = vunpack.c.l.b16 %v178
    %v354 = vunpack.c.h.b16 %v178
    %v355 = vunpack.c.l.b16 %v179
    %v356 = vunpack.c.h.b16 %v179
    %v357 = vunpack.c.l.b16 %v180
    %v358 = vunpack.c.h.b16 %v180
    %v359 = vunpack.c.l.b16 %v181
    %v360 = vunpack.c.h.b16 %v181
    %v361 = vunpack.c.l.b16 %v182
    %v362 = vunpack.c.h.b16 %v182
    %v363 = vunpack.c.l.b16 %v183
    %v364 = vunpack.c.h.b16 %v183
    %v365 = vunpack.c.l.b16 %v184
    %v366 = vunpack.c.h.b16 %v184
    %v367 = vunpack.c.l.b16 %v185
    %v368 = vunpack.c.h.b16 %v185
    %v369 = vunpack.c.l.b16 %v186
    %v370 = vunpack.c.h.b16 %v186
    %v371 = vunpack.c.l.b16 %v187
    %v372 = vunpack.c.h.b16 %v187
    %v373 = vunpack.c.l.b16 %v188
    %v374 = vunpack.c.h.b16 %v188
    %v375 = vunpack.c.l.b16 %v189
    %v376 = vunpack.c.h.b16 %v189
    %v377 = vunpack.c.l.b16 %v190
    %v378 = vunpack.c.h.b16 %v190
    %v379 = vunpack.c.l.b16 %v191
    %v380 = vunpack.c.h.b16 %v191
    %v381 = vunpack.c.l.b16 %v192
    %v382 = vunpack.c.h.b16 %v192
    %v383 = vunpack.c.l.b16 %v193
    %v384 = vunpack.c.h.b16 %v193
    %v385 = vunpack.c.l.b16 %v194
    %v386 = vunpack.c.h.b16 %v194
    %v387 = vunpack.c.l.b16 %v195
    %v388 = vunpack.c.h.b16 %v195
    %v389 = vunpack.c.l.b16 %v196
    %v390 = vunpack.c.h.b16 %v196
    %v391 = vunpack.c.l.b16 %v197
    %v392 = vunpack.c.h.b16 %v197
    %v393 = vunpack.c.l.b16 %v198
    %v394 = vunpack.c.h.b16 %v198
    %v395 = vunpack.c.l.b16 %v199
    %v396 = vunpack.c.h.b16 %v199
    %v397 = vunpack.c.l.b16 %v200
    %v398 = vunpack.c.h.b16 %v200
    %v399 = vunpack.c.l.b16 %v201
    %v400 = vunpack.c.h.b16 %v201
    %v401 = vunpack.c.l.b16 %v202
    %v402 = vunpack.c.h.b16 %v202
    %v403 = vunpack.c.l.b16 %v203
    %v404 = vunpack.c.h.b16 %v203
    %v405 = vunpack.c.l.b16 %v204
    %v406 = vunpack.c.h.b16 %v204
    %v407 = vunpack.c.l.b16 %v205
    %v408 = vunpack.c.h.b16 %v205
    %v409 = vunpack.c.l.b16 %v206
    %v410 = vunpack.c.h.b16 %v206
    %v411 = vunpack.c.l.b16 %v207
    %v412 = vunpack.c.h.b16 %v207
    %v413 = vunpack.c.l.b16 %v208
    %v414 = vunpack.c.h.b16 %v208
    %v415 = vunpack.c.l.b16 %v209
    %v416 = vunpack.c.h.b16 %v209
    %v417 = vunpack.c.l.b16 %v210
    %v418 = vunpack.c.h.b16 %v210
    %v419 = vunpack.c.l.b16 %v211
    %v420 = vunpack.c.h.b16 %v211
    %v421 = vunpack.c.l.b16 %v212
    %v422 = vunpack.c.h.b16 %v212
    %v423 = vunpack.c.l.b16 %v213
    %v424 = vunpack.c.h.b16 %v213
    %v425 = vpack.c.b16 %v299, %v297
    %v426 = vpack.c.b16 %v300, %v298
    %v427 = vpack.c.b16 %v303, %v301
    %v428 = vpack.c.b16 %v304, %v302
    %v429 = vpack.c.b16 %v307, %v305
    %v430 = vpack.c.b16 %v308, %v306
    %v431 = vpack.c.b16 %v311, %v309
    %v432 = vpack.c.b16 %v312, %v310
    %v433 = vpack.c.b16 %v315, %v313
    %v434 = vpack.c.b16 %v316, %v314
    %v435 = vpack.c.b16 %v319, %v317
    %v436 = vpack.c.b16 %v320, %v318
    %v437 = vpack.c.b16 %v323, %v321
    %v438 = vpack.c.b16 %v324, %v322
    %v439 = vpack.c.b16 %v327, %v325
    %v440 = vpack.c.b16 %v328, %v326
    %v441 = vpack.c.b16 %v331, %v329
    %v442 = vpack.c.b16 %v332, %v330
    %v443 = vpack.c.b16 %v335, %v333
    %v444 = vpack.c.b16 %v336, %v334
    %v445 = vpack.c.b16 %v339, %v337
    %v446 = vpack.c.b16 %v340, %v338
    %v447 = vpack.c.b16 %v343, %v341
    %v448 = vpack.c.b16 %v344, %v342
    %v449 = vpack.c.b16 %v347, %v345
    %v450 = vpack.c.b16 %v348, %v346
    %v451 = vpack.c.b16 %v351, %v349
    %v452 = vpack.c.b16 %v352, %v350
    %v453 = vpack.c.b16 %v355, %v353
    %v454 = vpack.c.b16 %v356, %v354
    %v455 = vpack.c.b16 %v359, %v357
    %v456 = vpack.c.b16 %v360, %v358
    %v457 = vpack.c.b16 %v363, %v361
    %v458 = vpack.c.b16 %v364, %v362
    %v459 = vpack.c.b16 %v367, %v365
    %v460 = vpack.c.b16 %v368, %v366
    %v461 = vpack.c.b16 %v371, %v369
    %v462 = vpack.c.b16 %v372, %v370
    %v463 = vpack.c.b16 %v375, %v373
    %v464 = vpack.c.b16 %v376, %v374
    %v465 = vpack.c.b16 %v379, %v377
    %v466 = vpack.c.b16 %v380, %v378
    %v467 = vpack.c.b16 %v383, %v381
    %v468 = vpack.c.b16 %v384, %v382
    %v469 = vpack.c.b16 %v387, %v385
    %v470 = vpack.c.b16 %v388, %v386
    %v471 = vpack.c.b16 %v391, %v389
    %v472 = vpack.c.b16 %v392, %v390
    %v473 = vpack.c.b16 %v395, %v393
    %v474 = vpack.c.b16 %v396, %v394
    %v475 = vpack.c.b16 %v399, %v397
    %v476 = vpack.c.b16 %v400, %v398
    %v477 = vpack.c.b16 %v403, %v401
    %v478 = vpack.c.b16 %v404, %v402
    %v479 = vpack.c.b16 %v407, %v405
    %v480 = vpack.c.b16 %v408, %v406
    %v481 = vpack.c.b16 %v411, %v409
    %v482 = vpack.c.b16 %v412, %v410
    %v483 = vpack.c.b16 %v415, %v413
    %v484 = vpack.c.b16 %v416, %v414
    %v485 = vpack.c.b16 %v419, %v417
    %v486 = vpack.c.b16 %v420, %v418
    %v487 = vpack.c.b16 %v423, %v421
    %v488 = vpack.c.b16 %v424, %v422
    %v540 = vunpack.c.l.b16 %v214
    %v541 = vunpack.c.l.b16 %v215
    %v542 = vunpack.c.l.b16 %v216
    %v543 = vunpack.c.l.b16 %v217
    %v544 = vunpack.c.l.b16 %v218
    %v545 = vunpack.c.l.b16 %v219
    %v546 = vunpack.c.l.b16 %v220
    %v547 = vunpack.c.l.b16 %v221
    %v548 = vunpack.c.l.b16 %v222
    %v549 = vunpack.c.l.b16 %v223
    %v550 = vunpack.c.l.b16 %v224
    %v551 = vunpack.c.l.b16 %v225
    %v552 = vunpack.c.l.b16 %v226
    %v553 = vunpack.c.l.b16 %v227
    %v554 = vunpack.c.l.b16 %v228
    %v555 = vunpack.c.l.b16 %v229
    %v556 = vunpack.c.l.b16 %v230
    %v557 = vunpack.c.l.b16 %v231
    %v558 = vunpack.c.l.b16 %v232
    %v559 = vpack.c.b16 %v541, %v540
    %v560 = vpack.c.b16 %v543, %v542
    %v561 = vpack.c.b16 %v545, %v544
    %v562 = vpack.c.b16 %v547, %v546
    %v563 = vpack.c.b16 %v549, %v548
    %v564 = vpack.c.b16 %v551, %v550
    %v565 = vpack.c.b16 %v553, %v552
    %v566 = vpack.c.b16 %v555, %v554
    %v567 = vpack.c.b16 %v557, %v556
    %v568 = vpack.c.b16 %v558, %v558
    %vm578 = vcmask 154624
    %v580 = vsel %vm578, %v426, 0
    %v583 = vsel %vm578, %v428, 0
    %v586 = vsel %vm578, %v430, 0
    %v589 = vsel %vm578, %v432, 0
    %v592 = vsel %vm578, %v434, 0
    %v595 = vsel %vm578, %v436, 0
    %v598 = vsel %vm578, %v438, 0
    %v601 = vsel %vm578, %v440, 0
    %v604 = vsel %vm578, %v442, 0
    %v607 = vsel %vm578, %v444, 0
    %v610 = vsel %vm578, %v446, 0
    %v613 = vsel %vm578, %v448, 0
    %v616 = vsel %vm578, %v450, 0
    %v619 = vsel %vm578, %v452, 0
    %v622 = vsel %vm578, %v454, 0
    %v625 = vsel %vm578, %v456, 0
    %v628 = vsel %vm578, %v458, 0
    %v631 = vsel %vm578, %v460, 0
    %v634 = vsel %vm578, %v462, 0
    %v637 = vsel %vm578, %v464, 0
    %v640 = vsel %vm578, %v466, 0
    %v643 = vsel %vm578, %v468, 0
    %v646 = vsel %vm578, %v470, 0
    %v649 = vsel %vm578, %v472, 0
    %v652 = vsel %vm578, %v474, 0
    %v655 = vsel %vm578, %v476, 0
    %v658 = vsel %vm578, %v478, 0
    %v661 = vsel %vm578, %v480, 0
    %v664 = vsel %vm578, %v482, 0
    %v667 = vsel %vm578, %v484, 0
    %v670 = vsel %vm578, %v486, 0
    %v673 = vsel %vm578, %v488, 0
    %vm675 = vcmask 1040384
    %vm676 = vcmask 1041408
    %v677 = vsel %vm675, 4294967295, 65535
    %v678 = vsel %vm676, %v677, 0
    %v680 = vand.u32 %v568, %v678
    %682 = vmatprep.subr.bf16.mxu0 0
    %683 = vmatpush1.bf16.msra.mxu0 %v566
    %684 = vmatprep.subr.bf16.mxu0 0
    %685 = vmatpush1.bf16.msra.mxu0 %v565
    %686 = vmatprep.subr.bf16.mxu0 0
    %687 = vmatpush1.bf16.msra.mxu0 %v564
    %688 = vmatprep.subr.bf16.mxu0 0
    %689 = vmatpush1.bf16.msra.mxu0 %v563
    %690 = vmatprep.subr.bf16.mxu0 0
    %691 = vmatpush1.bf16.msra.mxu0 %v562
    %692 = vmatprep.subr.bf16.mxu0 0
    %693 = vmatpush1.bf16.msra.mxu0 %v561
    %694 = vmatprep.subr.bf16.mxu0 0
    %695 = vmatpush1.bf16.msra.mxu0 %v560
    %696 = vmatprep.subr.bf16.mxu0 0
    %697 = vmatpush1.bf16.msra.mxu0 %v559
    %698 = vmatprep.subr.bf16.mxu0 0
    %699 = vmatpush2.bf16.msra.mxu0 0
    %700 = vmatprep.subr.bf16.mxu0 0
    %701 = vmatpush2.bf16.msra.mxu0 0
    %702 = vmatprep.subr.bf16.mxu0 0
    %703 = vmatpush2.bf16.msra.mxu0 0
    %704 = vmatprep.subr.bf16.mxu0 0
    %705 = vmatpush2.bf16.msra.mxu0 0
    %706 = vmatprep.subr.bf16.mxu0 0
    %707 = vmatpush2.bf16.msra.mxu0 0
    %708 = vmatprep.subr.bf16.mxu0 0
    %709 = vmatpush2.bf16.msra.mxu0 0
    %710 = vmatprep.subr.bf16.mxu0 0
    %711 = vmatpush2.bf16.msra.mxu0 %v680
    %712 = vmatprep.subr.bf16.mxu0 0
    %713 = vmatpush2.bf16.msra.mxu0 %v567
    %714 = vmatprep.mubr.bf16.mxu0 %v580
    %715 = vmatmul.mubr.bf16.gmra.mxu0 %v425
    %v716 = vpop.f32.mrf.mxu0
    %v717 = vadd.f32 0.0, %v716
    %v718 = vpop.f32.mrf.mxu0
    %v719 = vpop.f32.mrf.mxu0
    %v720 = vadd.f32 0.0, %v719
    %v721 = vpop.f32.mrf.mxu0
    %722 = vmatprep.mubr.bf16.mxu0 %v583
    %723 = vmatmul.mubr.bf16.gmra.mxu0 %v427
    %v724 = vpop.f32.mrf.mxu0
    %v725 = vadd.f32 0.0, %v724
    %v726 = vpop.f32.mrf.mxu0
    %v727 = vpop.f32.mrf.mxu0
    %v728 = vadd.f32 0.0, %v727
    %v729 = vpop.f32.mrf.mxu0
    %730 = vmatprep.mubr.bf16.mxu0 %v586
    %731 = vmatmul.mubr.bf16.gmra.mxu0 %v429
    %v732 = vpop.f32.mrf.mxu0
    %v733 = vadd.f32 0.0, %v732
    %v734 = vpop.f32.mrf.mxu0
    %v735 = vpop.f32.mrf.mxu0
    %v736 = vadd.f32 0.0, %v735
    %v737 = vpop.f32.mrf.mxu0
    %738 = vmatprep.mubr.bf16.mxu0 %v589
    %739 = vmatmul.mubr.bf16.gmra.mxu0 %v431
    %v740 = vpop.f32.mrf.mxu0
    %v741 = vadd.f32 0.0, %v740
    %v742 = vpop.f32.mrf.mxu0
    %v743 = vpop.f32.mrf.mxu0
    %v744 = vadd.f32 0.0, %v743
    %v745 = vpop.f32.mrf.mxu0
    %746 = vmatprep.mubr.bf16.mxu0 %v592
    %747 = vmatmul.mubr.bf16.gmra.mxu0 %v433
    %v748 = vpop.f32.mrf.mxu0
    %v749 = vadd.f32 0.0, %v748
    %v750 = vpop.f32.mrf.mxu0
    %v751 = vpop.f32.mrf.mxu0
    %v752 = vadd.f32 0.0, %v751
    %v753 = vpop.f32.mrf.mxu0
    %754 = vmatprep.mubr.bf16.mxu0 %v595
    %755 = vmatmul.mubr.bf16.gmra.mxu0 %v435
    %v756 = vpop.f32.mrf.mxu0
    %v757 = vadd.f32 0.0, %v756
    %v758 = vpop.f32.mrf.mxu0
    %v759 = vpop.f32.mrf.mxu0
    %v760 = vadd.f32 0.0, %v759
    %v761 = vpop.f32.mrf.mxu0
    %762 = vmatprep.mubr.bf16.mxu0 %v598
    %763 = vmatmul.mubr.bf16.gmra.mxu0 %v437
    %v764 = vpop.f32.mrf.mxu0
    %v765 = vadd.f32 0.0, %v764
    %v766 = vpop.f32.mrf.mxu0
    %v767 = vpop.f32.mrf.mxu0
    %v768 = vadd.f32 0.0, %v767
    %v769 = vpop.f32.mrf.mxu0
    %770 = vmatprep.mubr.bf16.mxu0 %v601
    %771 = vmatmul.mubr.bf16.gmra.mxu0 %v439
    %v772 = vpop.f32.mrf.mxu0
    %v773 = vadd.f32 0.0, %v772
    %v774 = vpop.f32.mrf.mxu0
    %v775 = vpop.f32.mrf.mxu0
    %v776 = vadd.f32 0.0, %v775
    %v777 = vpop.f32.mrf.mxu0
    %778 = vmatprep.mubr.bf16.mxu0 %v604
    %779 = vmatmul.mubr.bf16.gmra.mxu0 %v441
    %v780 = vpop.f32.mrf.mxu0
    %v781 = vadd.f32 0.0, %v780
    %v782 = vpop.f32.mrf.mxu0
    %v783 = vpop.f32.mrf.mxu0
    %v784 = vadd.f32 0.0, %v783
    %v785 = vpop.f32.mrf.mxu0
    %786 = vmatprep.mubr.bf16.mxu0 %v607
    %787 = vmatmul.mubr.bf16.gmra.mxu0 %v443
    %v788 = vpop.f32.mrf.mxu0
    %v789 = vadd.f32 0.0, %v788
    %v790 = vpop.f32.mrf.mxu0
    %v791 = vpop.f32.mrf.mxu0
    %v792 = vadd.f32 0.0, %v791
    %v793 = vpop.f32.mrf.mxu0
    %794 = vmatprep.mubr.bf16.mxu0 %v610
    %795 = vmatmul.mubr.bf16.gmra.mxu0 %v445
    %v796 = vpop.f32.mrf.mxu0
    %v797 = vadd.f32 0.0, %v796
    %v798 = vpop.f32.mrf.mxu0
    %v799 = vpop.f32.mrf.mxu0
    %v800 = vadd.f32 0.0, %v799
    %v801 = vpop.f32.mrf.mxu0
    %802 = vmatprep.mubr.bf16.mxu0 %v613
    %803 = vmatmul.mubr.bf16.gmra.mxu0 %v447
    %v804 = vpop.f32.mrf.mxu0
    %v805 = vadd.f32 0.0, %v804
    %v806 = vpop.f32.mrf.mxu0
    %v807 = vpop.f32.mrf.mxu0
    %v808 = vadd.f32 0.0, %v807
    %v809 = vpop.f32.mrf.mxu0
    %810 = vmatprep.mubr.bf16.mxu0 %v616
    %811 = vmatmul.mubr.bf16.gmra.mxu0 %v449
    %v812 = vpop.f32.mrf.mxu0
    %v813 = vadd.f32 0.0, %v812
    %v814 = vpop.f32.mrf.mxu0
    %v815 = vpop.f32.mrf.mxu0
    %v816 = vadd.f32 0.0, %v815
    %v817 = vpop.f32.mrf.mxu0
    %818 = vmatprep.mubr.bf16.mxu0 %v619
    %819 = vmatmul.mubr.bf16.gmra.mxu0 %v451
    %v820 = vpop.f32.mrf.mxu0
    %v821 = vadd.f32 0.0, %v820
    %v822 = vpop.f32.mrf.mxu0
    %v823 = vpop.f32.mrf.mxu0
    %v824 = vadd.f32 0.0, %v823
    %v825 = vpop.f32.mrf.mxu0
    %826 = vmatprep.mubr.bf16.mxu0 %v622
    %827 = vmatmul.mubr.bf16.gmra.mxu0 %v453
    %v828 = vpop.f32.mrf.mxu0
    %v829 = vadd.f32 0.0, %v828
    %v830 = vpop.f32.mrf.mxu0
    %v831 = vpop.f32.mrf.mxu0
    %v832 = vadd.f32 0.0, %v831
    %v833 = vpop.f32.mrf.mxu0
    %834 = vmatprep.mubr.bf16.mxu0 %v625
    %835 = vmatmul.mubr.bf16.gmra.mxu0 %v455
    %v836 = vpop.f32.mrf.mxu0
    %v837 = vadd.f32 0.0, %v836
    %v838 = vpop.f32.mrf.mxu0
    %v839 = vpop.f32.mrf.mxu0
    %v840 = vadd.f32 0.0, %v839
    %v841 = vpop.f32.mrf.mxu0
    %842 = vmatprep.mubr.bf16.mxu0 %v628
    %843 = vmatmul.mubr.bf16.gmra.mxu0 %v457
    %v844 = vpop.f32.mrf.mxu0
    %v845 = vadd.f32 0.0, %v844
    %v846 = vpop.f32.mrf.mxu0
    %v847 = vpop.f32.mrf.mxu0
    %v848 = vadd.f32 0.0, %v847
    %v849 = vpop.f32.mrf.mxu0
    %850 = vmatprep.mubr.bf16.mxu0 %v631
    %851 = vmatmul.mubr.bf16.gmra.mxu0 %v459
    %v852 = vpop.f32.mrf.mxu0
    %v853 = vadd.f32 0.0, %v852
    %v854 = vpop.f32.mrf.mxu0
    %v855 = vpop.f32.mrf.mxu0
    %v856 = vadd.f32 0.0, %v855
    %v857 = vpop.f32.mrf.mxu0
    %858 = vmatprep.mubr.bf16.mxu0 %v634
    %859 = vmatmul.mubr.bf16.gmra.mxu0 %v461
    %v860 = vpop.f32.mrf.mxu0
    %v861 = vadd.f32 0.0, %v860
    %v862 = vpop.f32.mrf.mxu0
    %v863 = vpop.f32.mrf.mxu0
    %v864 = vadd.f32 0.0, %v863
    %v865 = vpop.f32.mrf.mxu0
    %866 = vmatprep.mubr.bf16.mxu0 %v637
    %867 = vmatmul.mubr.bf16.gmra.mxu0 %v463
    %v868 = vpop.f32.mrf.mxu0
    %v869 = vadd.f32 0.0, %v868
    %v870 = vpop.f32.mrf.mxu0
    %v871 = vpop.f32.mrf.mxu0
    %v872 = vadd.f32 0.0, %v871
    %v873 = vpop.f32.mrf.mxu0
    %874 = vmatprep.mubr.bf16.mxu0 %v640
    %875 = vmatmul.mubr.bf16.gmra.mxu0 %v465
    %v876 = vpop.f32.mrf.mxu0
    %v877 = vadd.f32 0.0, %v876
    %v878 = vpop.f32.mrf.mxu0
    %v879 = vpop.f32.mrf.mxu0
    %v880 = vadd.f32 0.0, %v879
    %v881 = vpop.f32.mrf.mxu0
    %882 = vmatprep.mubr.bf16.mxu0 %v643
    %883 = vmatmul.mubr.bf16.gmra.mxu0 %v467
    %v884 = vpop.f32.mrf.mxu0
    %v885 = vadd.f32 0.0, %v884
    %v886 = vpop.f32.mrf.mxu0
    %v887 = vpop.f32.mrf.mxu0
    %v888 = vadd.f32 0.0, %v887
    %v889 = vpop.f32.mrf.mxu0
    %890 = vmatprep.mubr.bf16.mxu0 %v646
    %891 = vmatmul.mubr.bf16.gmra.mxu0 %v469
    %v892 = vpop.f32.mrf.mxu0
    %v893 = vadd.f32 0.0, %v892
    %v894 = vpop.f32.mrf.mxu0
    %v895 = vpop.f32.mrf.mxu0
    %v896 = vadd.f32 0.0, %v895
    %v897 = vpop.f32.mrf.mxu0
    %898 = vmatprep.mubr.bf16.mxu0 %v649
    %899 = vmatmul.mubr.bf16.gmra.mxu0 %v471
    %v900 = vpop.f32.mrf.mxu0
    %v901 = vadd.f32 0.0, %v900
    %v902 = vpop.f32.mrf.mxu0
    %v903 = vpop.f32.mrf.mxu0
    %v904 = vadd.f32 0.0, %v903
    %v905 = vpop.f32.mrf.mxu0
    %906 = vmatprep.mubr.bf16.mxu0 %v652
    %907 = vmatmul.mubr.bf16.gmra.mxu0 %v473
    %v908 = vpop.f32.mrf.mxu0
    %v909 = vadd.f32 0.0, %v908
    %v910 = vpop.f32.mrf.mxu0
    %v911 = vpop.f32.mrf.mxu0
    %v912 = vadd.f32 0.0, %v911
    %v913 = vpop.f32.mrf.mxu0
    %914 = vmatprep.mubr.bf16.mxu0 %v655
    %915 = vmatmul.mubr.bf16.gmra.mxu0 %v475
    %v916 = vpop.f32.mrf.mxu0
    %v917 = vadd.f32 0.0, %v916
    %v918 = vpop.f32.mrf.mxu0
    %v919 = vpop.f32.mrf.mxu0
    %v920 = vadd.f32 0.0, %v919
    %v921 = vpop.f32.mrf.mxu0
    %922 = vmatprep.mubr.bf16.mxu0 %v658
    %923 = vmatmul.mubr.bf16.gmra.mxu0 %v477
    %v924 = vpop.f32.mrf.mxu0
    %v925 = vadd.f32 0.0, %v924
    %v926 = vpop.f32.mrf.mxu0
    %v927 = vpop.f32.mrf.mxu0
    %v928 = vadd.f32 0.0, %v927
    %v929 = vpop.f32.mrf.mxu0
    %930 = vmatprep.mubr.bf16.mxu0 %v661
    %931 = vmatmul.mubr.bf16.gmra.mxu0 %v479
    %v932 = vpop.f32.mrf.mxu0
    %v933 = vadd.f32 0.0, %v932
    %v934 = vpop.f32.mrf.mxu0
    %v935 = vpop.f32.mrf.mxu0
    %v936 = vadd.f32 0.0, %v935
    %v937 = vpop.f32.mrf.mxu0
    %938 = vmatprep.mubr.bf16.mxu0 %v664
    %939 = vmatmul.mubr.bf16.gmra.mxu0 %v481
    %v940 = vpop.f32.mrf.mxu0
    %v941 = vadd.f32 0.0, %v940
    %v942 = vpop.f32.mrf.mxu0
    %v943 = vpop.f32.mrf.mxu0
    %v944 = vadd.f32 0.0, %v943
    %v945 = vpop.f32.mrf.mxu0
    %946 = vmatprep.mubr.bf16.mxu0 %v667
    %947 = vmatmul.mubr.bf16.gmra.mxu0 %v483
    %v948 = vpop.f32.mrf.mxu0
    %v949 = vadd.f32 0.0, %v948
    %v950 = vpop.f32.mrf.mxu0
    %v951 = vpop.f32.mrf.mxu0
    %v952 = vadd.f32 0.0, %v951
    %v953 = vpop.f32.mrf.mxu0
    %954 = vmatprep.mubr.bf16.mxu0 %v670
    %955 = vmatmul.mubr.bf16.gmra.mxu0 %v485
    %v956 = vpop.f32.mrf.mxu0
    %v957 = vadd.f32 0.0, %v956
    %v958 = vpop.f32.mrf.mxu0
    %v959 = vpop.f32.mrf.mxu0
    %v960 = vadd.f32 0.0, %v959
    %v961 = vpop.f32.mrf.mxu0
    %962 = vmatprep.mubr.bf16.mxu0 %v673
    %963 = vmatmul.mubr.bf16.gmra.mxu0 %v487
    %v964 = vpop.f32.mrf.mxu0
    %v965 = vadd.f32 0.0, %v964
    %v966 = vpop.f32.mrf.mxu0
    %v967 = vpop.f32.mrf.mxu0
    %v968 = vadd.f32 0.0, %v967
    %v969 = vpop.f32.mrf.mxu0
    %970 = vdwg.mxu0
    %v971 = vadd.f32 %v86, %v717
    %v972 = vadd.f32 %v87, %v720
    %v973 = vadd.f32 %v88, %v725
    %v974 = vadd.f32 %v89, %v728
    %v975 = vadd.f32 %v90, %v733
    %v976 = vadd.f32 %v91, %v736
    %v977 = vadd.f32 %v92, %v741
    %v978 = vadd.f32 %v93, %v744
    %v979 = vadd.f32 %v94, %v749
    %v980 = vadd.f32 %v95, %v752
    %v981 = vadd.f32 %v96, %v757
    %v982 = vadd.f32 %v97, %v760
    %v983 = vadd.f32 %v98, %v765
    %v984 = vadd.f32 %v99, %v768
    %v985 = vadd.f32 %v100, %v773
    %v986 = vadd.f32 %v101, %v776
    %v987 = vadd.f32 %v102, %v781
    %v988 = vadd.f32 %v103, %v784
    %v989 = vadd.f32 %v104, %v789
    %v990 = vadd.f32 %v105, %v792
    %v991 = vadd.f32 %v106, %v797
    %v992 = vadd.f32 %v107, %v800
    %v993 = vadd.f32 %v108, %v805
    %v994 = vadd.f32 %v109, %v808
    %v995 = vadd.f32 %v110, %v813
    %v996 = vadd.f32 %v111, %v816
    %v997 = vadd.f32 %v112, %v821
    %v998 = vadd.f32 %v113, %v824
    %v999 = vadd.f32 %v114, %v829
    %v1000 = vadd.f32 %v115, %v832
    %v1001 = vadd.f32 %v116, %v837
    %v1002 = vadd.f32 %v117, %v840
    %v1003 = vadd.f32 %v118, %v845
    %v1004 = vadd.f32 %v119, %v848
    %v1005 = vadd.f32 %v120, %v853
    %v1006 = vadd.f32 %v121, %v856
    %v1007 = vadd.f32 %v122, %v861
    %v1008 = vadd.f32 %v123, %v864
    %v1009 = vadd.f32 %v124, %v869
    %v1010 = vadd.f32 %v125, %v872
    %v1011 = vadd.f32 %v126, %v877
    %v1012 = vadd.f32 %v127, %v880
    %v1013 = vadd.f32 %v128, %v885
    %v1014 = vadd.f32 %v129, %v888
    %v1015 = vadd.f32 %v130, %v893
    %v1016 = vadd.f32 %v131, %v896
    %v1017 = vadd.f32 %v132, %v901
    %v1018 = vadd.f32 %v133, %v904
    %v1019 = vadd.f32 %v134, %v909
    %v1020 = vadd.f32 %v135, %v912
    %v1021 = vadd.f32 %v136, %v917
    %v1022 = vadd.f32 %v137, %v920
    %v1023 = vadd.f32 %v138, %v925
    %v1024 = vadd.f32 %v139, %v928
    %v1025 = vadd.f32 %v140, %v933
    %v1026 = vadd.f32 %v141, %v936
    %v1027 = vadd.f32 %v142, %v941
    %v1028 = vadd.f32 %v143, %v944
    %v1029 = vadd.f32 %v144, %v949
    %v1030 = vadd.f32 %v145, %v952
    %v1031 = vadd.f32 %v146, %v957
    %v1032 = vadd.f32 %v147, %v960
    %v1033 = vadd.f32 %v148, %v965
    %v1034 = vadd.f32 %v149, %v968
    %vm1035 = vcmask 523264
    %1036 = vst.msk [vmem:[#allocation2] sm:$0xff] %vm1035, %v971
    %1037 = vst.msk [vmem:[#allocation2 + $0x8] sm:$0xff] %vm1035, %v972
    %1038 = vst.msk [vmem:[#allocation2 + $0x10] sm:$0xff] %vm1035, %v973
    %1039 = vst.msk [vmem:[#allocation2 + $0x18] sm:$0xff] %vm1035, %v974
    %1040 = vst.msk [vmem:[#allocation2 + $0x20] sm:$0xff] %vm1035, %v975
    %1041 = vst.msk [vmem:[#allocation2 + $0x28] sm:$0xff] %vm1035, %v976
    %1042 = vst.msk [vmem:[#allocation2 + $0x30] sm:$0xff] %vm1035, %v977
    %1043 = vst.msk [vmem:[#allocation2 + $0x38] sm:$0xff] %vm1035, %v978
    %1044 = vst.msk [vmem:[#allocation2 + $0x40] sm:$0xff] %vm1035, %v979
    %1045 = vst.msk [vmem:[#allocation2 + $0x48] sm:$0xff] %vm1035, %v980
    %1046 = vst.msk [vmem:[#allocation2 + $0x50] sm:$0xff] %vm1035, %v981
    %1047 = vst.msk [vmem:[#allocation2 + $0x58] sm:$0xff] %vm1035, %v982
    %1048 = vst.msk [vmem:[#allocation2 + $0x60] sm:$0xff] %vm1035, %v983
    %1049 = vst.msk [vmem:[#allocation2 + $0x68] sm:$0xff] %vm1035, %v984
    %1050 = vst.msk [vmem:[#allocation2 + $0x70] sm:$0xff] %vm1035, %v985
    %1051 = vst.msk [vmem:[#allocation2 + $0x78] sm:$0xff] %vm1035, %v986
    %1052 = vst.msk [vmem:[#allocation2 + $0x80] sm:$0xff] %vm1035, %v987
    %1053 = vst.msk [vmem:[#allocation2 + $0x88] sm:$0xff] %vm1035, %v988
    %1054 = vst.msk [vmem:[#allocation2 + $0x90] sm:$0xff] %vm1035, %v989
    %1055 = vst.msk [vmem:[#allocation2 + $0x98] sm:$0xff] %vm1035, %v990
    %1056 = vst.msk [vmem:[#allocation2 + $0xa0] sm:$0xff] %vm1035, %v991
    %1057 = vst.msk [vmem:[#allocation2 + $0xa8] sm:$0xff] %vm1035, %v992
    %1058 = vst.msk [vmem:[#allocation2 + $0xb0] sm:$0xff] %vm1035, %v993
    %1059 = vst.msk [vmem:[#allocation2 + $0xb8] sm:$0xff] %vm1035, %v994
    %1060 = vst.msk [vmem:[#allocation2 + $0xc0] sm:$0xff] %vm1035, %v995
    %1061 = vst.msk [vmem:[#allocation2 + $0xc8] sm:$0xff] %vm1035, %v996
    %1062 = vst.msk [vmem:[#allocation2 + $0xd0] sm:$0xff] %vm1035, %v997
    %1063 = vst.msk [vmem:[#allocation2 + $0xd8] sm:$0xff] %vm1035, %v998
    %1064 = vst.msk [vmem:[#allocation2 + $0xe0] sm:$0xff] %vm1035, %v999
    %1065 = vst.msk [vmem:[#allocation2 + $0xe8] sm:$0xff] %vm1035, %v1000
    %1066 = vst.msk [vmem:[#allocation2 + $0xf0] sm:$0xff] %vm1035, %v1001
    %1067 = vst.msk [vmem:[#allocation2 + $0xf8] sm:$0xff] %vm1035, %v1002
    %1068 = vst.msk [vmem:[#allocation2 + $0x100] sm:$0xff] %vm1035, %v1003
    %1069 = vst.msk [vmem:[#allocation2 + $0x108] sm:$0xff] %vm1035, %v1004
    %1070 = vst.msk [vmem:[#allocation2 + $0x110] sm:$0xff] %vm1035, %v1005
    %1071 = vst.msk [vmem:[#allocation2 + $0x118] sm:$0xff] %vm1035, %v1006
    %1072 = vst.msk [vmem:[#allocation2 + $0x120] sm:$0xff] %vm1035, %v1007
    %1073 = vst.msk [vmem:[#allocation2 + $0x128] sm:$0xff] %vm1035, %v1008
    %1074 = vst.msk [vmem:[#allocation2 + $0x130] sm:$0xff] %vm1035, %v1009
    %1075 = vst.msk [vmem:[#allocation2 + $0x138] sm:$0xff] %vm1035, %v1010
    %1076 = vst.msk [vmem:[#allocation2 + $0x140] sm:$0xff] %vm1035, %v1011
    %1077 = vst.msk [vmem:[#allocation2 + $0x148] sm:$0xff] %vm1035, %v1012
    %1078 = vst.msk [vmem:[#allocation2 + $0x150] sm:$0xff] %vm1035, %v1013
    %1079 = vst.msk [vmem:[#allocation2 + $0x158] sm:$0xff] %vm1035, %v1014
    %1080 = vst.msk [vmem:[#allocation2 + $0x160] sm:$0xff] %vm1035, %v1015
    %1081 = vst.msk [vmem:[#allocation2 + $0x168] sm:$0xff] %vm1035, %v1016
    %1082 = vst.msk [vmem:[#allocation2 + $0x170] sm:$0xff] %vm1035, %v1017
    %1083 = vst.msk [vmem:[#allocation2 + $0x178] sm:$0xff] %vm1035, %v1018
    %1084 = vst.msk [vmem:[#allocation2 + $0x180] sm:$0xff] %vm1035, %v1019
    %1085 = vst.msk [vmem:[#allocation2 + $0x188] sm:$0xff] %vm1035, %v1020
    %1086 = vst.msk [vmem:[#allocation2 + $0x190] sm:$0xff] %vm1035, %v1021
    %1087 = vst.msk [vmem:[#allocation2 + $0x198] sm:$0xff] %vm1035, %v1022
    %1088 = vst.msk [vmem:[#allocation2 + $0x1a0] sm:$0xff] %vm1035, %v1023
    %1089 = vst.msk [vmem:[#allocation2 + $0x1a8] sm:$0xff] %vm1035, %v1024
    %1090 = vst.msk [vmem:[#allocation2 + $0x1b0] sm:$0xff] %vm1035, %v1025
    %1091 = vst.msk [vmem:[#allocation2 + $0x1b8] sm:$0xff] %vm1035, %v1026
    %1092 = vst.msk [vmem:[#allocation2 + $0x1c0] sm:$0xff] %vm1035, %v1027
    %1093 = vst.msk [vmem:[#allocation2 + $0x1c8] sm:$0xff] %vm1035, %v1028
    %1094 = vst.msk [vmem:[#allocation2 + $0x1d0] sm:$0xff] %vm1035, %v1029
    %1095 = vst.msk [vmem:[#allocation2 + $0x1d8] sm:$0xff] %vm1035, %v1030
    %1096 = vst.msk [vmem:[#allocation2 + $0x1e0] sm:$0xff] %vm1035, %v1031
    %1097 = vst.msk [vmem:[#allocation2 + $0x1e8] sm:$0xff] %vm1035, %v1032
    %1098 = vst.msk [vmem:[#allocation2 + $0x1f0] sm:$0xff] %vm1035, %v1033
    %1099 = vst.msk [vmem:[#allocation2 + $0x1f8] sm:$0xff] %vm1035, %v1034
    // Predicated region
    $region14: #{tpu_custom_call.1} parent=1 // pred_check
      %p1100 = pneg %p17
    $region15: #{tpu_custom_call.1} parent=1 // pred_check_branch
      %1102 = sbr.rel (%p1100) target = $region17
    $region16: #{tpu_custom_call.1} parent=1 // pred_region
      %v1103 = vld [vmem:[#allocation2] sm:$0xff]
      %v1104 = vld [vmem:[#allocation2 + $0x8] sm:$0xff]
      %v1105 = vld [vmem:[#allocation2 + $0x10] sm:$0xff]
      %v1106 = vld [vmem:[#allocation2 + $0x18] sm:$0xff]
      %v1107 = vld [vmem:[#allocation2 + $0x20] sm:$0xff]
      %v1108 = vld [vmem:[#allocation2 + $0x28] sm:$0xff]
      %v1109 = vld [vmem:[#allocation2 + $0x30] sm:$0xff]
      %v1110 = vld [vmem:[#allocation2 + $0x38] sm:$0xff]
      %v1111 = vld [vmem:[#allocation2 + $0x40] sm:$0xff]
      %v1112 = vld [vmem:[#allocation2 + $0x48] sm:$0xff]
      %v1113 = vld [vmem:[#allocation2 + $0x50] sm:$0xff]
      %v1114 = vld [vmem:[#allocation2 + $0x58] sm:$0xff]
      %v1115 = vld [vmem:[#allocation2 + $0x60] sm:$0xff]
      %v1116 = vld [vmem:[#allocation2 + $0x68] sm:$0xff]
      %v1117 = vld [vmem:[#allocation2 + $0x70] sm:$0xff]
      %v1118 = vld [vmem:[#allocation2 + $0x78] sm:$0xff]
      %v1119 = vld [vmem:[#allocation2 + $0x80] sm:$0xff]
      %v1120 = vld [vmem:[#allocation2 + $0x88] sm:$0xff]
      %v1121 = vld [vmem:[#allocation2 + $0x90] sm:$0xff]
      %v1122 = vld [vmem:[#allocation2 + $0x98] sm:$0xff]
      %v1123 = vld [vmem:[#allocation2 + $0xa0] sm:$0xff]
      %v1124 = vld [vmem:[#allocation2 + $0xa8] sm:$0xff]
      %v1125 = vld [vmem:[#allocation2 + $0xb0] sm:$0xff]
      %v1126 = vld [vmem:[#allocation2 + $0xb8] sm:$0xff]
      %v1127 = vld [vmem:[#allocation2 + $0xc0] sm:$0xff]
      %v1128 = vld [vmem:[#allocation2 + $0xc8] sm:$0xff]
      %v1129 = vld [vmem:[#allocation2 + $0xd0] sm:$0xff]
      %v1130 = vld [vmem:[#allocation2 + $0xd8] sm:$0xff]
      %v1131 = vld [vmem:[#allocation2 + $0xe0] sm:$0xff]
      %v1132 = vld [vmem:[#allocation2 + $0xe8] sm:$0xff]
      %v1133 = vld [vmem:[#allocation2 + $0xf0] sm:$0xff]
      %v1134 = vld [vmem:[#allocation2 + $0xf8] sm:$0xff]
      %v1135 = vld [vmem:[#allocation2 + $0x100] sm:$0xff]
      %v1136 = vld [vmem:[#allocation2 + $0x108] sm:$0xff]
      %v1137 = vld [vmem:[#allocation2 + $0x110] sm:$0xff]
      %v1138 = vld [vmem:[#allocation2 + $0x118] sm:$0xff]
      %v1139 = vld [vmem:[#allocation2 + $0x120] sm:$0xff]
      %v1140 = vld [vmem:[#allocation2 + $0x128] sm:$0xff]
      %v1141 = vld [vmem:[#allocation2 + $0x130] sm:$0xff]
      %v1142 = vld [vmem:[#allocation2 + $0x138] sm:$0xff]
      %v1143 = vld [vmem:[#allocation2 + $0x140] sm:$0xff]
      %v1144 = vld [vmem:[#allocation2 + $0x148] sm:$0xff]
      %v1145 = vld [vmem:[#allocation2 + $0x150] sm:$0xff]
      %v1146 = vld [vmem:[#allocation2 + $0x158] sm:$0xff]
      %v1147 = vld [vmem:[#allocation2 + $0x160] sm:$0xff]
      %v1148 = vld [vmem:[#allocation2 + $0x168] sm:$0xff]
      %v1149 = vld [vmem:[#allocation2 + $0x170] sm:$0xff]
      %v1150 = vld [vmem:[#allocation2 + $0x178] sm:$0xff]
      %v1151 = vld [vmem:[#allocation2 + $0x180] sm:$0xff]
      %v1152 = vld [vmem:[#allocation2 + $0x188] sm:$0xff]
      %v1153 = vld [vmem:[#allocation2 + $0x190] sm:$0xff]
      %v1154 = vld [vmem:[#allocation2 + $0x198] sm:$0xff]
      %v1155 = vld [vmem:[#allocation2 + $0x1a0] sm:$0xff]
      %v1156 = vld [vmem:[#allocation2 + $0x1a8] sm:$0xff]
      %v1157 = vld [vmem:[#allocation2 + $0x1b0] sm:$0xff]
      %v1158 = vld [vmem:[#allocation2 + $0x1b8] sm:$0xff]
      %v1159 = vld [vmem:[#allocation2 + $0x1c0] sm:$0xff]
      %v1160 = vld [vmem:[#allocation2 + $0x1c8] sm:$0xff]
      %v1161 = vld [vmem:[#allocation2 + $0x1d0] sm:$0xff]
      %v1162 = vld [vmem:[#allocation2 + $0x1d8] sm:$0xff]
      %v1163 = vld [vmem:[#allocation2 + $0x1e0] sm:$0xff]
      %v1164 = vld [vmem:[#allocation2 + $0x1e8] sm:$0xff]
      %v1165 = vld [vmem:[#allocation2 + $0x1f0] sm:$0xff]
      %v1166 = vld [vmem:[#allocation2 + $0x1f8] sm:$0xff]
      %1167 = vst.msk [vmem:[%s2] sm:$0xff] %vm1035, %v1103
      %1168 = vst.msk [vmem:[%s2 + $0x8] sm:$0xff] %vm1035, %v1104
      %1169 = vst.msk [vmem:[%s2 + $0x10] sm:$0xff] %vm1035, %v1105
      %1170 = vst.msk [vmem:[%s2 + $0x18] sm:$0xff] %vm1035, %v1106
      %1171 = vst.msk [vmem:[%s2 + $0x20] sm:$0xff] %vm1035, %v1107
      %1172 = vst.msk [vmem:[%s2 + $0x28] sm:$0xff] %vm1035, %v1108
      %1173 = vst.msk [vmem:[%s2 + $0x30] sm:$0xff] %vm1035, %v1109
      %1174 = vst.msk [vmem:[%s2 + $0x38] sm:$0xff] %vm1035, %v1110
      %1175 = vst.msk [vmem:[%s2 + $0x40] sm:$0xff] %vm1035, %v1111
      %1176 = vst.msk [vmem:[%s2 + $0x48] sm:$0xff] %vm1035, %v1112
      %1177 = vst.msk [vmem:[%s2 + $0x50] sm:$0xff] %vm1035, %v1113
      %1178 = vst.msk [vmem:[%s2 + $0x58] sm:$0xff] %vm1035, %v1114
      %1179 = vst.msk [vmem:[%s2 + $0x60] sm:$0xff] %vm1035, %v1115
      %1180 = vst.msk [vmem:[%s2 + $0x68] sm:$0xff] %vm1035, %v1116
      %1181 = vst.msk [vmem:[%s2 + $0x70] sm:$0xff] %vm1035, %v1117
      %1182 = vst.msk [vmem:[%s2 + $0x78] sm:$0xff] %vm1035, %v1118
      %1183 = vst.msk [vmem:[%s2 + $0x80] sm:$0xff] %vm1035, %v1119
      %1184 = vst.msk [vmem:[%s2 + $0x88] sm:$0xff] %vm1035, %v1120
      %1185 = vst.msk [vmem:[%s2 + $0x90] sm:$0xff] %vm1035, %v1121
      %1186 = vst.msk [vmem:[%s2 + $0x98] sm:$0xff] %vm1035, %v1122
      %1187 = vst.msk [vmem:[%s2 + $0xa0] sm:$0xff] %vm1035, %v1123
      %1188 = vst.msk [vmem:[%s2 + $0xa8] sm:$0xff] %vm1035, %v1124
      %1189 = vst.msk [vmem:[%s2 + $0xb0] sm:$0xff] %vm1035, %v1125
      %1190 = vst.msk [vmem:[%s2 + $0xb8] sm:$0xff] %vm1035, %v1126
      %1191 = vst.msk [vmem:[%s2 + $0xc0] sm:$0xff] %vm1035, %v1127
      %1192 = vst.msk [vmem:[%s2 + $0xc8] sm:$0xff] %vm1035, %v1128
      %1193 = vst.msk [vmem:[%s2 + $0xd0] sm:$0xff] %vm1035, %v1129
      %1194 = vst.msk [vmem:[%s2 + $0xd8] sm:$0xff] %vm1035, %v1130
      %1195 = vst.msk [vmem:[%s2 + $0xe0] sm:$0xff] %vm1035, %v1131
      %1196 = vst.msk [vmem:[%s2 + $0xe8] sm:$0xff] %vm1035, %v1132
      %1197 = vst.msk [vmem:[%s2 + $0xf0] sm:$0xff] %vm1035, %v1133
      %1198 = vst.msk [vmem:[%s2 + $0xf8] sm:$0xff] %vm1035, %v1134
      %1199 = vst.msk [vmem:[%s2 + $0x100] sm:$0xff] %vm1035, %v1135
      %1200 = vst.msk [vmem:[%s2 + $0x108] sm:$0xff] %vm1035, %v1136
      %1201 = vst.msk [vmem:[%s2 + $0x110] sm:$0xff] %vm1035, %v1137
      %1202 = vst.msk [vmem:[%s2 + $0x118] sm:$0xff] %vm1035, %v1138
      %1203 = vst.msk [vmem:[%s2 + $0x120] sm:$0xff] %vm1035, %v1139
      %1204 = vst.msk [vmem:[%s2 + $0x128] sm:$0xff] %vm1035, %v1140
      %1205 = vst.msk [vmem:[%s2 + $0x130] sm:$0xff] %vm1035, %v1141
      %1206 = vst.msk [vmem:[%s2 + $0x138] sm:$0xff] %vm1035, %v1142
      %1207 = vst.msk [vmem:[%s2 + $0x140] sm:$0xff] %vm1035, %v1143
      %1208 = vst.msk [vmem:[%s2 + $0x148] sm:$0xff] %vm1035, %v1144
      %1209 = vst.msk [vmem:[%s2 + $0x150] sm:$0xff] %vm1035, %v1145
      %1210 = vst.msk [vmem:[%s2 + $0x158] sm:$0xff] %vm1035, %v1146
      %1211 = vst.msk [vmem:[%s2 + $0x160] sm:$0xff] %vm1035, %v1147
      %1212 = vst.msk [vmem:[%s2 + $0x168] sm:$0xff] %vm1035, %v1148
      %1213 = vst.msk [vmem:[%s2 + $0x170] sm:$0xff] %vm1035, %v1149
      %1214 = vst.msk [vmem:[%s2 + $0x178] sm:$0xff] %vm1035, %v1150
      %1215 = vst.msk [vmem:[%s2 + $0x180] sm:$0xff] %vm1035, %v1151
      %1216 = vst.msk [vmem:[%s2 + $0x188] sm:$0xff] %vm1035, %v1152
      %1217 = vst.msk [vmem:[%s2 + $0x190] sm:$0xff] %vm1035, %v1153
      %1218 = vst.msk [vmem:[%s2 + $0x198] sm:$0xff] %vm1035, %v1154
      %1219 = vst.msk [vmem:[%s2 + $0x1a0] sm:$0xff] %vm1035, %v1155
      %1220 = vst.msk [vmem:[%s2 + $0x1a8] sm:$0xff] %vm1035, %v1156
      %1221 = vst.msk [vmem:[%s2 + $0x1b0] sm:$0xff] %vm1035, %v1157
      %1222 = vst.msk [vmem:[%s2 + $0x1b8] sm:$0xff] %vm1035, %v1158
      %1223 = vst.msk [vmem:[%s2 + $0x1c0] sm:$0xff] %vm1035, %v1159
      %1224 = vst.msk [vmem:[%s2 + $0x1c8] sm:$0xff] %vm1035, %v1160
      %1225 = vst.msk [vmem:[%s2 + $0x1d0] sm:$0xff] %vm1035, %v1161
      %1226 = vst.msk [vmem:[%s2 + $0x1d8] sm:$0xff] %vm1035, %v1162
      %1227 = vst.msk [vmem:[%s2 + $0x1e0] sm:$0xff] %vm1035, %v1163
      %1228 = vst.msk [vmem:[%s2 + $0x1e8] sm:$0xff] %vm1035, %v1164
      %1229 = vst.msk [vmem:[%s2 + $0x1f0] sm:$0xff] %vm1035, %v1165
      %1230 = vst.msk [vmem:[%s2 + $0x1f8] sm:$0xff] %vm1035, %v1166
      %v1231 = vsel %vm1035, %v1103, 0.0
      %v1232 = vsel %vm1035, %v1104, 0.0
      %v1233 = vadd.f32 %v1231, %v1232
      %v1234 = vsel %vm1035, %v1105, 0.0
      %v1235 = vadd.f32 %v1233, %v1234
      %v1236 = vsel %vm1035, %v1106, 0.0
      %v1237 = vadd.f32 %v1235, %v1236
      %v1238 = vsel %vm1035, %v1107, 0.0
      %v1239 = vadd.f32 %v1237, %v1238
      %v1240 = vsel %vm1035, %v1108, 0.0
      %v1241 = vadd.f32 %v1239, %v1240
      %v1242 = vsel %vm1035, %v1109, 0.0
      %v1243 = vadd.f32 %v1241, %v1242
      %v1244 = vsel %vm1035, %v1110, 0.0
      %v1245 = vadd.f32 %v1243, %v1244
      %v1246 = vsel %vm1035, %v1111, 0.0
      %v1247 = vadd.f32 %v1245, %v1246
      %v1248 = vsel %vm1035, %v1112, 0.0
      %v1249 = vadd.f32 %v1247, %v1248
      %v1250 = vsel %vm1035, %v1113, 0.0
      %v1251 = vadd.f32 %v1249, %v1250
      %v1252 = vsel %vm1035, %v1114, 0.0
      %v1253 = vadd.f32 %v1251, %v1252
      %v1254 = vsel %vm1035, %v1115, 0.0
      %v1255 = vadd.f32 %v1253, %v1254
      %v1256 = vsel %vm1035, %v1116, 0.0
      %v1257 = vadd.f32 %v1255, %v1256
      %v1258 = vsel %vm1035, %v1117, 0.0
      %v1259 = vadd.f32 %v1257, %v1258
      %v1260 = vsel %vm1035, %v1118, 0.0
      %v1261 = vadd.f32 %v1259, %v1260
      %v1262 = vsel %vm1035, %v1119, 0.0
      %v1263 = vadd.f32 %v1261, %v1262
      %v1264 = vsel %vm1035, %v1120, 0.0
      %v1265 = vadd.f32 %v1263, %v1264
      %v1266 = vsel %vm1035, %v1121, 0.0
      %v1267 = vadd.f32 %v1265, %v1266
      %v1268 = vsel %vm1035, %v1122, 0.0
      %v1269 = vadd.f32 %v1267, %v1268
      %v1270 = vsel %vm1035, %v1123, 0.0
      %v1271 = vadd.f32 %v1269, %v1270
      %v1272 = vsel %vm1035, %v1124, 0.0
      %v1273 = vadd.f32 %v1271, %v1272
      %v1274 = vsel %vm1035, %v1125, 0.0
      %v1275 = vadd.f32 %v1273, %v1274
      %v1276 = vsel %vm1035, %v1126, 0.0
      %v1277 = vadd.f32 %v1275, %v1276
      %v1278 = vsel %vm1035, %v1127, 0.0
      %v1279 = vadd.f32 %v1277, %v1278
      %v1280 = vsel %vm1035, %v1128, 0.0
      %v1281 = vadd.f32 %v1279, %v1280
      %v1282 = vsel %vm1035, %v1129, 0.0
      %v1283 = vadd.f32 %v1281, %v1282
      %v1284 = vsel %vm1035, %v1130, 0.0
      %v1285 = vadd.f32 %v1283, %v1284
      %v1286 = vsel %vm1035, %v1131, 0.0
      %v1287 = vadd.f32 %v1285, %v1286
      %v1288 = vsel %vm1035, %v1132, 0.0
      %v1289 = vadd.f32 %v1287, %v1288
      %v1290 = vsel %vm1035, %v1133, 0.0
      %v1291 = vadd.f32 %v1289, %v1290
      %v1292 = vsel %vm1035, %v1134, 0.0
      %v1293 = vadd.f32 %v1291, %v1292
      %v1294 = vsel %vm1035, %v1135, 0.0
      %v1295 = vadd.f32 %v1293, %v1294
      %v1296 = vsel %vm1035, %v1136, 0.0
      %v1297 = vadd.f32 %v1295, %v1296
      %v1298 = vsel %vm1035, %v1137, 0.0
      %v1299 = vadd.f32 %v1297, %v1298
      %v1300 = vsel %vm1035, %v1138, 0.0
      %v1301 = vadd.f32 %v1299, %v1300
      %v1302 = vsel %vm1035, %v1139, 0.0
      %v1303 = vadd.f32 %v1301, %v1302
      %v1304 = vsel %vm1035, %v1140, 0.0
      %v1305 = vadd.f32 %v1303, %v1304
      %v1306 = vsel %vm1035, %v1141, 0.0
      %v1307 = vadd.f32 %v1305, %v1306
      %v1308 = vsel %vm1035, %v1142, 0.0
      %v1309 = vadd.f32 %v1307, %v1308
      %v1310 = vsel %vm1035, %v1143, 0.0
      %v1311 = vadd.f32 %v1309, %v1310
      %v1312 = vsel %vm1035, %v1144, 0.0
      %v1313 = vadd.f32 %v1311, %v1312
      %v1314 = vsel %vm1035, %v1145, 0.0
      %v1315 = vadd.f32 %v1313, %v1314
      %v1316 = vsel %vm1035, %v1146, 0.0
      %v1317 = vadd.f32 %v1315, %v1316
      %v1318 = vsel %vm1035, %v1147, 0.0
      %v1319 = vadd.f32 %v1317, %v1318
      %v1320 = vsel %vm1035, %v1148, 0.0
      %v1321 = vadd.f32 %v1319, %v1320
      %v1322 = vsel %vm1035, %v1149, 0.0
      %v1323 = vadd.f32 %v1321, %v1322
      %v1324 = vsel %vm1035, %v1150, 0.0
      %v1325 = vadd.f32 %v1323, %v1324
      %v1326 = vsel %vm1035, %v1151, 0.0
      %v1327 = vadd.f32 %v1325, %v1326
      %v1328 = vsel %vm1035, %v1152, 0.0
      %v1329 = vadd.f32 %v1327, %v1328
      %v1330 = vsel %vm1035, %v1153, 0.0
      %v1331 = vadd.f32 %v1329, %v1330
      %v1332 = vsel %vm1035, %v1154, 0.0
      %v1333 = vadd.f32 %v1331, %v1332
      %v1334 = vsel %vm1035, %v1155, 0.0
      %v1335 = vadd.f32 %v1333, %v1334
      %v1336 = vsel %vm1035, %v1156, 0.0
      %v1337 = vadd.f32 %v1335, %v1336
      %v1338 = vsel %vm1035, %v1157, 0.0
      %v1339 = vadd.f32 %v1337, %v1338
      %v1340 = vsel %vm1035, %v1158, 0.0
      %v1341 = vadd.f32 %v1339, %v1340
      %v1342 = vsel %vm1035, %v1159, 0.0
      %v1343 = vadd.f32 %v1341, %v1342
      %v1344 = vsel %vm1035, %v1160, 0.0
      %v1345 = vadd.f32 %v1343, %v1344
      %v1346 = vsel %vm1035, %v1161, 0.0
      %v1347 = vadd.f32 %v1345, %v1346
      %v1348 = vsel %vm1035, %v1162, 0.0
      %v1349 = vadd.f32 %v1347, %v1348
      %v1350 = vsel %vm1035, %v1163, 0.0
      %v1351 = vadd.f32 %v1349, %v1350
      %v1352 = vsel %vm1035, %v1164, 0.0
      %v1353 = vadd.f32 %v1351, %v1352
      %v1354 = vsel %vm1035, %v1165, 0.0
      %v1355 = vadd.f32 %v1353, %v1354
      %v1356 = vsel %vm1035, %v1166, 0.0
      %v1357 = vadd.f32 %v1355, %v1356
      %v1358 = vrot.slane %v1357, 4
      %v1359 = vadd.f32 %v1357, %v1358
      %v1360 = vrot.slane %v1359, 2
      %v1361 = vadd.f32 %v1359, %v1360
      %v1362 = vrot.slane %v1361, 1
      %v1363 = vadd.f32 %v1361, %v1362
      %vm1364 = vcmask 516096
      %1365 = vst.msk [vmem:[#allocation3] sm:$0x1] %vm1364, %v1363
      %v1366 = vmul.f32 %v1103, %v1103
      %v1367 = vmul.f32 %v1104, %v1104
      %v1368 = vmul.f32 %v1105, %v1105
      %v1369 = vmul.f32 %v1106, %v1106
      %v1370 = vmul.f32 %v1107, %v1107
      %v1371 = vmul.f32 %v1108, %v1108
      %v1372 = vmul.f32 %v1109, %v1109
      %v1373 = vmul.f32 %v1110, %v1110
      %v1374 = vmul.f32 %v1111, %v1111
      %v1375 = vmul.f32 %v1112, %v1112
      %v1376 = vmul.f32 %v1113, %v1113
      %v1377 = vmul.f32 %v1114, %v1114
      %v1378 = vmul.f32 %v1115, %v1115
      %v1379 = vmul.f32 %v1116, %v1116
      %v1380 = vmul.f32 %v1117, %v1117
      %v1381 = vmul.f32 %v1118, %v1118
      %v1382 = vmul.f32 %v1119, %v1119
      %v1383 = vmul.f32 %v1120, %v1120
      %v1384 = vmul.f32 %v1121, %v1121
      %v1385 = vmul.f32 %v1122, %v1122
      %v1386 = vmul.f32 %v1123, %v1123
      %v1387 = vmul.f32 %v1124, %v1124
      %v1388 = vmul.f32 %v1125, %v1125
      %v1389 = vmul.f32 %v1126, %v1126
      %v1390 = vmul.f32 %v1127, %v1127
      %v1391 = vmul.f32 %v1128, %v1128
      %v1392 = vmul.f32 %v1129, %v1129
      %v1393 = vmul.f32 %v1130, %v1130
      %v1394 = vmul.f32 %v1131, %v1131
      %v1395 = vmul.f32 %v1132, %v1132
      %v1396 = vmul.f32 %v1133, %v1133
      %v1397 = vmul.f32 %v1134, %v1134
      %v1398 = vmul.f32 %v1135, %v1135
      %v1399 = vmul.f32 %v1136, %v1136
      %v1400 = vmul.f32 %v1137, %v1137
      %v1401 = vmul.f32 %v1138, %v1138
      %v1402 = vmul.f32 %v1139, %v1139
      %v1403 = vmul.f32 %v1140, %v1140
      %v1404 = vmul.f32 %v1141, %v1141
      %v1405 = vmul.f32 %v1142, %v1142
      %v1406 = vmul.f32 %v1143, %v1143
      %v1407 = vmul.f32 %v1144, %v1144
      %v1408 = vmul.f32 %v1145, %v1145
      %v1409 = vmul.f32 %v1146, %v1146
      %v1410 = vmul.f32 %v1147, %v1147
      %v1411 = vmul.f32 %v1148, %v1148
      %v1412 = vmul.f32 %v1149, %v1149
      %v1413 = vmul.f32 %v1150, %v1150
      %v1414 = vmul.f32 %v1151, %v1151
      %v1415 = vmul.f32 %v1152, %v1152
      %v1416 = vmul.f32 %v1153, %v1153
      %v1417 = vmul.f32 %v1154, %v1154
      %v1418 = vmul.f32 %v1155, %v1155
      %v1419 = vmul.f32 %v1156, %v1156
      %v1420 = vmul.f32 %v1157, %v1157
      %v1421 = vmul.f32 %v1158, %v1158
      %v1422 = vmul.f32 %v1159, %v1159
      %v1423 = vmul.f32 %v1160, %v1160
      %v1424 = vmul.f32 %v1161, %v1161
      %v1425 = vmul.f32 %v1162, %v1162
      %v1426 = vmul.f32 %v1163, %v1163
      %v1427 = vmul.f32 %v1164, %v1164
      %v1428 = vmul.f32 %v1165, %v1165
      %v1429 = vmul.f32 %v1166, %v1166
      %v1430 = vsel %vm1035, %v1366, 0.0
      %v1431 = vsel %vm1035, %v1367, 0.0
      %v1432 = vadd.f32 %v1430, %v1431
      %v1433 = vsel %vm1035, %v1368, 0.0
      %v1434 = vadd.f32 %v1432, %v1433
      %v1435 = vsel %vm1035, %v1369, 0.0
      %v1436 = vadd.f32 %v1434, %v1435
      %v1437 = vsel %vm1035, %v1370, 0.0
      %v1438 = vadd.f32 %v1436, %v1437
      %v1439 = vsel %vm1035, %v1371, 0.0
      %v1440 = vadd.f32 %v1438, %v1439
      %v1441 = vsel %vm1035, %v1372, 0.0
      %v1442 = vadd.f32 %v1440, %v1441
      %v1443 = vsel %vm1035, %v1373, 0.0
      %v1444 = vadd.f32 %v1442, %v1443
      %v1445 = vsel %vm1035, %v1374, 0.0
      %v1446 = vadd.f32 %v1444, %v1445
      %v1447 = vsel %vm1035, %v1375, 0.0
      %v1448 = vadd.f32 %v1446, %v1447
      %v1449 = vsel %vm1035, %v1376, 0.0
      %v1450 = vadd.f32 %v1448, %v1449
      %v1451 = vsel %vm1035, %v1377, 0.0
      %v1452 = vadd.f32 %v1450, %v1451
      %v1453 = vsel %vm1035, %v1378, 0.0
      %v1454 = vadd.f32 %v1452, %v1453
      %v1455 = vsel %vm1035, %v1379, 0.0
      %v1456 = vadd.f32 %v1454, %v1455
      %v1457 = vsel %vm1035, %v1380, 0.0
      %v1458 = vadd.f32 %v1456, %v1457
      %v1459 = vsel %vm1035, %v1381, 0.0
      %v1460 = vadd.f32 %v1458, %v1459
      %v1461 = vsel %vm1035, %v1382, 0.0
      %v1462 = vadd.f32 %v1460, %v1461
      %v1463 = vsel %vm1035, %v1383, 0.0
      %v1464 = vadd.f32 %v1462, %v1463
      %v1465 = vsel %vm1035, %v1384, 0.0
      %v1466 = vadd.f32 %v1464, %v1465
      %v1467 = vsel %vm1035, %v1385, 0.0
      %v1468 = vadd.f32 %v1466, %v1467
      %v1469 = vsel %vm1035, %v1386, 0.0
      %v1470 = vadd.f32 %v1468, %v1469
      %v1471 = vsel %vm1035, %v1387, 0.0
      %v1472 = vadd.f32 %v1470, %v1471
      %v1473 = vsel %vm1035, %v1388, 0.0
      %v1474 = vadd.f32 %v1472, %v1473
      %v1475 = vsel %vm1035, %v1389, 0.0
      %v1476 = vadd.f32 %v1474, %v1475
      %v1477 = vsel %vm1035, %v1390, 0.0
      %v1478 = vadd.f32 %v1476, %v1477
      %v1479 = vsel %vm1035, %v1391, 0.0
      %v1480 = vadd.f32 %v1478, %v1479
      %v1481 = vsel %vm1035, %v1392, 0.0
      %v1482 = vadd.f32 %v1480, %v1481
      %v1483 = vsel %vm1035, %v1393, 0.0
      %v1484 = vadd.f32 %v1482, %v1483
      %v1485 = vsel %vm1035, %v1394, 0.0
      %v1486 = vadd.f32 %v1484, %v1485
      %v1487 = vsel %vm1035, %v1395, 0.0
      %v1488 = vadd.f32 %v1486, %v1487
      %v1489 = vsel %vm1035, %v1396, 0.0
      %v1490 = vadd.f32 %v1488, %v1489
      %v1491 = vsel %vm1035, %v1397, 0.0
      %v1492 = vadd.f32 %v1490, %v1491
      %v1493 = vsel %vm1035, %v1398, 0.0
      %v1494 = vadd.f32 %v1492, %v1493
      %v1495 = vsel %vm1035, %v1399, 0.0
      %v1496 = vadd.f32 %v1494, %v1495
      %v1497 = vsel %vm1035, %v1400, 0.0
      %v1498 = vadd.f32 %v1496, %v1497
      %v1499 = vsel %vm1035, %v1401, 0.0
      %v1500 = vadd.f32 %v1498, %v1499
      %v1501 = vsel %vm1035, %v1402, 0.0
      %v1502 = vadd.f32 %v1500, %v1501
      %v1503 = vsel %vm1035, %v1403, 0.0
      %v1504 = vadd.f32 %v1502, %v1503
      %v1505 = vsel %vm1035, %v1404, 0.0
      %v1506 = vadd.f32 %v1504, %v1505
      %v1507 = vsel %vm1035, %v1405, 0.0
      %v1508 = vadd.f32 %v1506, %v1507
      %v1509 = vsel %vm1035, %v1406, 0.0
      %v1510 = vadd.f32 %v1508, %v1509
      %v1511 = vsel %vm1035, %v1407, 0.0
      %v1512 = vadd.f32 %v1510, %v1511
      %v1513 = vsel %vm1035, %v1408, 0.0
      %v1514 = vadd.f32 %v1512, %v1513
      %v1515 = vsel %vm1035, %v1409, 0.0
      %v1516 = vadd.f32 %v1514, %v1515
      %v1517 = vsel %vm1035, %v1410, 0.0
      %v1518 = vadd.f32 %v1516, %v1517
      %v1519 = vsel %vm1035, %v1411, 0.0
      %v1520 = vadd.f32 %v1518, %v1519
      %v1521 = vsel %vm1035, %v1412, 0.0
      %v1522 = vadd.f32 %v1520, %v1521
      %v1523 = vsel %vm1035, %v1413, 0.0
      %v1524 = vadd.f32 %v1522, %v1523
      %v1525 = vsel %vm1035, %v1414, 0.0
      %v1526 = vadd.f32 %v1524, %v1525
      %v1527 = vsel %vm1035, %v1415, 0.0
      %v1528 = vadd.f32 %v1526, %v1527
      %v1529 = vsel %vm1035, %v1416, 0.0
      %v1530 = vadd.f32 %v1528, %v1529
      %v1531 = vsel %vm1035, %v1417, 0.0
      %v1532 = vadd.f32 %v1530, %v1531
      %v1533 = vsel %vm1035, %v1418, 0.0
      %v1534 = vadd.f32 %v1532, %v1533
      %v1535 = vsel %vm1035, %v1419, 0.0
      %v1536 = vadd.f32 %v1534, %v1535
      %v1537 = vsel %vm1035, %v1420, 0.0
      %v1538 = vadd.f32 %v1536, %v1537
      %v1539 = vsel %vm1035, %v1421, 0.0
      %v1540 = vadd.f32 %v1538, %v1539
      %v1541 = vsel %vm1035, %v1422, 0.0
      %v1542 = vadd.f32 %v1540, %v1541
      %v1543 = vsel %vm1035, %v1423, 0.0
      %v1544 = vadd.f32 %v1542, %v1543
      %v1545 = vsel %vm1035, %v1424, 0.0
      %v1546 = vadd.f32 %v1544, %v1545
      %v1547 = vsel %vm1035, %v1425, 0.0
      %v1548 = vadd.f32 %v1546, %v1547
      %v1549 = vsel %vm1035, %v1426, 0.0
      %v1550 = vadd.f32 %v1548, %v1549
      %v1551 = vsel %vm1035, %v1427, 0.0
      %v1552 = vadd.f32 %v1550, %v1551
      %v1553 = vsel %vm1035, %v1428, 0.0
      %v1554 = vadd.f32 %v1552, %v1553
      %v1555 = vsel %vm1035, %v1429, 0.0
      %v1556 = vadd.f32 %v1554, %v1555
      %v1557 = vrot.slane %v1556, 4
      %v1558 = vadd.f32 %v1556, %v1557
      %v1559 = vrot.slane %v1558, 2
      %v1560 = vadd.f32 %v1558, %v1559
      %v1561 = vrot.slane %v1560, 1
      %v1562 = vadd.f32 %v1560, %v1561
      %1563 = vst.msk [vmem:[#allocation5] sm:$0x1] %vm1364, %v1562
    $region17: #{tpu_custom_call.1} parent=1 // pred_fallthru
      _
    // Predicated region
    $region18: #{tpu_custom_call.1} parent=1 // pred_check
      _
    $region19: #{tpu_custom_call.1} parent=1 // pred_check_branch
      %1565 = sbr.rel (0) target = $region21
    $region20: #{tpu_custom_call.1} parent=1 // pred_region
      _
    $region21: #{tpu_custom_call.1} parent=1 // pred_fallthru
      _
    // Predicated region
    $region22: #{tpu_custom_call.1} parent=1 // pred_check
      _
    $region23: #{tpu_custom_call.1} parent=1 // pred_check_branch
      %1567 = sbr.rel (0) target = $region25
    $region24: #{tpu_custom_call.1} parent=1 // pred_region
      %s1569 = ssub.s32 16, 16
      %1570 = vsyncadd [#allocation4], %s1569
      %s1572 = sshll.u32 [#allocation3], 4
      %s1573 = int_to_ptr.vmem [resolvable:$true] %s1572
      %1575 = dma.vmem_to_hbm [thread:$0]  %s1573, 16, %s3, [#allocation4]
    $region25: #{tpu_custom_call.1} parent=1 // pred_fallthru
      _
    // Predicated region
    $region26: #{tpu_custom_call.1} parent=1 // pred_check
      _
    $region27: #{tpu_custom_call.1} parent=1 // pred_check_branch
      %1577 = sbr.rel (0) target = $region29
    $region28: #{tpu_custom_call.1} parent=1 // pred_region
      %s1579 = ssub.s32 16, 16
      %1580 = vsyncadd [#allocation6], %s1579
      %s1582 = sshll.u32 [#allocation5], 4
      %s1583 = int_to_ptr.vmem [resolvable:$true] %s1582
      %1585 = dma.vmem_to_hbm [thread:$0]  %s1583, 16, %s4, [#allocation6]
    $region29: #{tpu_custom_call.1} parent=1 // pred_fallthru
      _
    // Predicated region
    $region30: #{tpu_custom_call.1} parent=1 // pred_check
      _
    $region31: #{tpu_custom_call.1} parent=1 // pred_check_branch
      %1587 = sbr.rel (0) target = $region33
    $region32: #{tpu_custom_call.1} parent=1 // pred_region
      _
    $region33: #{tpu_custom_call.1} parent=1 // pred_fallthru
      _
    // Predicated region
    $region34: #{tpu_custom_call.1} parent=1 // pred_check
      _
    $region35: #{tpu_custom_call.1} parent=1 // pred_check_branch
      %1589 = sbr.rel (0) target = $region37
    $region36: #{tpu_custom_call.1} parent=1 // pred_region
      %1590 = dma.done [#allocation4], 16
    $region37: #{tpu_custom_call.1} parent=1 // pred_fallthru
      _
    // Predicated region
    $region38: #{tpu_custom_call.1} parent=1 // pred_check
      _
    $region39: #{tpu_custom_call.1} parent=1 // pred_check_branch
      %1592 = sbr.rel (0) target = $region41
    $region40: #{tpu_custom_call.1} parent=1 // pred_region
      %1593 = dma.done [#allocation6], 16
    $region41: #{tpu_custom_call.1} parent=1 // pred_fallthru
      _
    %1594 = vsyncpa [#allocation4], 1
    %1595 = vsyncpa [#allocation6], 1

</llo_original>
